<compile_context>
chip_gen: v5e
topology: v5e:2x2
jax: 0.10.0
libtpu: 0.0.40
codegen_flags: <defaults>
</compile_context>

<pallas_src>
import functools

import jax
import jax.numpy as jnp
import numpy as np
from jax.experimental import pallas as pl
from jax.experimental.pallas import tpu as pltpu


# ----------------------------------------------------------------------------
# Host-side parameter packing (structured matrices, done once)
# ----------------------------------------------------------------------------
def _shift_matrices(B, H):
    """S[0] @ slab -> row y-1 (zero at image top); S[1] @ slab -> row y+1 (zero at bottom)."""
    BH = B * H
    S = np.zeros((2, BH, BH), np.float32)
    for b in range(B):
        for y in range(H):
            if y > 0:
                S[0, b * H + y, b * H + y - 1] = 1.0
            if y + 1 < H:
                S[1, b * H + y, b * H + y + 1] = 1.0
    return S


def _band_matrices(w, W):
    """Pack an HWIO (K,K,Cin,Cout) conv kernel into K x-banded (W*Cin, W*Cout) matrices.

    band[ky][xin*Cin+ci, xout*Cout+co] = w[ky, xin-xout+p, ci, co]  (0 outside the band),
    so sum_ky (row-shifted slab) @ band[ky] equals the 'SAME' 2-D convolution.
    """
    K, _, Cin, Cout = w.shape
    p = K // 2
    bands = []
    for ky in range(K):
        acc = jnp.zeros((W * Cin, W * Cout), jnp.float32)
        for kx in range(K):
            E = np.zeros((W, W), np.float32)          # x-tap placement (static 0/1)
            for xout in range(W):
                xin = xout + kx - p
                if 0 <= xin < W:
                    E[xin, xout] = 1.0
            acc = acc + jnp.kron(jnp.asarray(E), w[ky, kx])
        bands.append(acc)
    return jnp.stack(bands)                            # (K, W*Cin, W*Cout)


def _squeeze_matrices(B, H0, W0, C0, bs=2):
    """Squeeze as matmuls on lane-dense slabs: z1 = sum_dy (R[dy] @ z0) @ L[dy]."""
    H1, W1, C1 = H0 // bs, W0 // bs, bs * bs * C0
    R = np.zeros((bs, B * H1, B * H0), np.float32)
    L = np.zeros((bs, W0 * C0, W1 * C1), np.float32)
    for dy in range(bs):
        for b in range(B):
            for y1 in range(H1):
                R[dy, b * H1 + y1, b * H0 + bs * y1 + dy] = 1.0
        for x1 in range(W1):
            for dx in range(bs):
                for c in range(C0):
                    L[dy, (bs * x1 + dx) * C0 + c,
                      x1 * C1 + dy * bs * C0 + dx * C0 + c] = 1.0
    return R, L


def _pack_block(bp, B, H, W):
    Cin, Cint = bp["w1"].shape[2], bp["w1"].shape[3]
    scale = jnp.tile(jnp.exp(bp["an_log_scale"]), W).reshape(1, W * Cin)  # exp folded host-side
    shift = jnp.tile(bp["an_shift"], W).reshape(1, W * Cin)
    S = jnp.asarray(_shift_matrices(B, H))
    W1b = _band_matrices(bp["w1"], W)                                     # (3, W*Cin, W*Cint)
    b1 = jnp.tile(bp["b1"], W).reshape(1, W * Cint)
    W2d = jnp.kron(jnp.eye(W, dtype=jnp.float32), bp["w2"][0, 0])         # block-diag 1x1 conv
    b2 = jnp.tile(bp["b2"], W).reshape(1, W * Cint)
    W3b = _band_matrices(bp["w3"], W)                                     # (3, W*Cint, W*Cin)
    b3 = jnp.tile(bp["b3"], W).reshape(1, W * Cin)
    return [scale, shift, S, W1b, b1, W2d, b2, W3b, b3]


def pack_network(params, block_cfgs, in_shape_nhwc, n_classes):
    """Pack all parameters into kernel-ready lane-dense matrices (once, outside jit)."""
    B, H, W, C = in_shape_nhwc                        # shape AFTER the init squeeze
    inputs, plan = [], []
    curH, curW, curC = H, W, C
    for bp, cfg in zip(params["blocks"], block_cfgs):
        if cfg["stride"] == 2:
            R, L = _squeeze_matrices(B, curH, curW, curC)
            inputs += [jnp.asarray(R), jnp.asarray(L)]
            plan.append(("squeeze",))
            curH, curW, curC = curH // 2, curW // 2, 4 * curC
        inputs += _pack_block(bp, B, curH, curW)
        plan.append(("block", bool(cfg["input_nonlin"])))
    c = params["clf"]
    H1, W1, C1 = curH, curW, curC
    A = np.tile(np.eye(C1, dtype=np.float32), (W1, 1))                    # lane -> channel sum
    P = np.kron(np.eye(B, dtype=np.float32),
                np.ones((1, H1), np.float32)).astype(np.float32)          # per-image row sum
    out_lanes = max(128, -(-n_classes // 128) * 128)                      # full-lane logits store
    wl_pad = jnp.zeros((C1, out_lanes), jnp.float32).at[:, :n_classes].set(c["wl"])
    bl_pad = jnp.zeros((1, out_lanes), jnp.float32).at[:, :n_classes].set(c["bl"])
    inputs += [jnp.asarray(A), jnp.asarray(P),
               jnp.tile(c["gamma"], W1).reshape(1, W1 * C1),
               jnp.tile(c["beta"], W1).reshape(1, W1 * C1),
               wl_pad, bl_pad]
    plan.append(("classifier", B * H1 * W1, H1 * W1, W1))
    meta = dict(B=B, H0=H, W0=W, C0=C, H1=H1, W1=W1, C1=C1,
                n_classes=n_classes, out_lanes=out_lanes)
    return inputs, tuple(plan), meta


# ----------------------------------------------------------------------------
# The fused whole-network kernel
# ----------------------------------------------------------------------------
def _conv3x3_band(h, S_ref, Wb_ref, b_ref):
    """'SAME' 3x3 conv on a lane-dense (B*H, W*Cin) slab via 3 banded matmuls."""
    prev_row = jnp.dot(S_ref[0], h, preferred_element_type=jnp.float32)   # row y-1 (0 at border)
    next_row = jnp.dot(S_ref[1], h, preferred_element_type=jnp.float32)   # row y+1 (0 at border)
    out = (jnp.dot(prev_row, Wb_ref[0], preferred_element_type=jnp.float32)
           + jnp.dot(h, Wb_ref[1], preferred_element_type=jnp.float32)
           + jnp.dot(next_row, Wb_ref[2], preferred_element_type=jnp.float32))
    return out + b_ref[...]


def _make_network_kernel(plan):
    """blocks + squeeze + classifier, all VMEM resident, batch folded into M."""

    def kernel(*refs):
        in_refs, (z_out_ref, logits_ref) = refs[:-2], refs[-2:]
        z = in_refs[0][...]                              # (B*H0, W0*C0) lane-dense slab
        i = 1
        for op in plan:
            if op[0] == "squeeze":
                R, L = in_refs[i], in_refs[i + 1]
                i += 2
                z = (jnp.dot(jnp.dot(R[0], z, preferred_element_type=jnp.float32),
                             L[0], preferred_element_type=jnp.float32)
                     + jnp.dot(jnp.dot(R[1], z, preferred_element_type=jnp.float32),
                               L[1], preferred_element_type=jnp.float32))
            elif op[0] == "block":
                sc, sh, S, W1b, b1, W2d, b2, W3b, b3 = in_refs[i:i + 9]
                i += 9
                x = z * sc[...] + sh[...]                # ActNorm
                h = jnp.maximum(x, 0.0) if op[1] else x  # input nonlinearity (static flag)
                h1 = jnp.maximum(_conv3x3_band(h, S, W1b, b1), 0.0)
                h2 = jnp.maximum(
                    jnp.dot(h1, W2d[...], preferred_element_type=jnp.float32) + b2[...], 0.0)
                z = x + _conv3x3_band(h2, S, W3b, b3)    # residual on post-ActNorm x
            else:                                        # classifier
                A, P, g, be, wl, bl = in_refs[i:i + 6]
                i += 6
                _, bhw, hw, wrep = op
                z_out_ref[...] = z                       # final features, lane-dense store
                # training-mode BatchNorm2d batch statistics (biased variance)
                zA = jnp.dot(z, A[...], preferred_element_type=jnp.float32)        # (B*H, C)
                zzA = jnp.dot(z * z, A[...], preferred_element_type=jnp.float32)
                mean_c = jnp.sum(zA, axis=0, keepdims=True) * (1.0 / bhw)           # (1, C)
                var_c = jnp.sum(zzA, axis=0, keepdims=True) * (1.0 / bhw) - mean_c * mean_c
                mean_l = jnp.concatenate([mean_c] * wrep, axis=1)                   # (1, W*C)
                var_l = jnp.concatenate([var_c] * wrep, axis=1)
                zn = (z - mean_l) * jax.lax.rsqrt(var_l + 1e-5) * g[...] + be[...]
                zn = jnp.maximum(zn, 0.0)
                pooled = jnp.dot(P[...],
                                 jnp.dot(zn, A[...], preferred_element_type=jnp.float32),
                                 preferred_element_type=jnp.float32) * (1.0 / hw)   # (B, C)
                logits_ref[...] = (jnp.dot(pooled, wl[...],
                                           preferred_element_type=jnp.float32) + bl[...])

    return kernel


# ----------------------------------------------------------------------------
# Wrapper (layout glue in plain JAX)
# ----------------------------------------------------------------------------
def squeeze_nhwc(x, bs=2):
    """Space-to-depth matching the PyTorch Squeeze: out_ch = hoff*(bs*C) + woff*C + c."""
    B, H, W, C = x.shape
    x = x.reshape(B, H // bs, bs, W // bs, bs, C)
    x = jnp.transpose(x, (0, 1, 3, 2, 4, 5))
    return x.reshape(B, H // bs, W // bs, bs * bs * C)


def iresnet_forward_pallas(x_nchw, packed_inputs, *, plan, meta):
    B, H0, W0, C0 = meta["B"], meta["H0"], meta["W0"], meta["C0"]
    H1, W1, C1 = meta["H1"], meta["W1"], meta["C1"]
    z = jnp.transpose(x_nchw, (0, 2, 3, 1))              # NCHW -> NHWC
    z = squeeze_nhwc(z)                                   # init_ds = 2 (inj_pad = 0)
    x_slab = z.reshape(B * H0, W0 * C0)                   # lane-dense, row-major slab
    z_slab, logits_pad = pl.pallas_call(
        _make_network_kernel(plan),
        out_shape=(jax.ShapeDtypeStruct((B * H1, W1 * C1), jnp.float32),
                   jax.ShapeDtypeStruct((B, meta["out_lanes"]), jnp.float32)),
        compiler_params=pltpu.CompilerParams(vmem_limit_bytes=64 * 1024 * 1024),
    )(x_slab, *packed_inputs)
    z_out = z_slab.reshape(B, H1, W1, C1)                 # free row-major reshape
    logits = logits_pad[:, :meta["n_classes"]]
    return logits, jnp.transpose(z_out, (0, 3, 1, 2))     # z back to NCHW


# ----------------------------------------------------------------------------
# Pure-JAX reference for correctness checking
# ----------------------------------------------------------------------------
def forward_ref(x_nchw, params, block_cfgs):
    def conv_ref(x, w, b):
        y = jax.lax.conv_general_dilated(
            x, w, (1, 1), "SAME",
            dimension_numbers=("NHWC", "HWIO", "NHWC"),
            precision=jax.lax.Precision.HIGHEST)
        return y + b

    z = jnp.transpose(x_nchw, (0, 2, 3, 1))
    z = squeeze_nhwc(z)
    for bp, cfg in zip(params["blocks"], block_cfgs):
        if cfg["stride"] == 2:
            z = squeeze_nhwc(z)
        z = z * jnp.exp(bp["an_log_scale"]) + bp["an_shift"]
        h = jax.nn.relu(z) if cfg["input_nonlin"] else z
        h = conv_ref(h, bp["w1"], bp["b1"])
        h = conv_ref(jax.nn.relu(h), bp["w2"], bp["b2"])
        h = conv_ref(jax.nn.relu(h), bp["w3"], bp["b3"])
        z = z + h
    c = params["clf"]
    mean = jnp.mean(z, axis=(0, 1, 2), keepdims=True)
    var = jnp.mean((z - mean) ** 2, axis=(0, 1, 2), keepdims=True)
    zn = (z - mean) / jnp.sqrt(var + 1e-5) * c["gamma"] + c["beta"]
    zn = jax.nn.relu(zn)
    pooled = jnp.mean(zn, axis=(1, 2))
    logits = pooled @ c["wl"] + c["bl"]
    return logits, jnp.transpose(z, (0, 3, 1, 2))


# ----------------------------------------------------------------------------
# Deterministic synthetic parameters
# ----------------------------------------------------------------------------
def make_params(key, block_cfgs, n_classes, coeff=0.9):
    blocks = []
    for cfg in block_cfgs:
        cin, cint = cfg["in_ch"], cfg["int_ch"]
        key, *ks = jax.random.split(key, 9)

        def w_init(k, kk, ci, co):
            scale = coeff / np.sqrt(kk * kk * ci)
            return scale * jax.random.normal(k, (kk, kk, ci, co), jnp.float32)

        blocks.append(dict(
            an_log_scale=0.05 * jax.random.normal(ks[0], (cin,), jnp.float32),
            an_shift=0.05 * jax.random.normal(ks[1], (cin,), jnp.float32),
            w1=w_init(ks[2], 3, cin, cint),
            b1=0.01 * jax.random.normal(ks[3], (cint,), jnp.float32),
            w2=w_init(ks[4], 1, cint, cint),
            b2=0.01 * jax.random.normal(ks[5], (cint,), jnp.float32),
            w3=w_init(ks[6], 3, cint, cin),
            b3=0.01 * jax.random.normal(ks[7], (cin,), jnp.float32),
        ))
    key, k1, k2, k3, k4 = jax.random.split(key, 5)
    final_c = block_cfgs[-1]["in_ch"]
    clf = dict(
        gamma=1.0 + 0.05 * jax.random.normal(k1, (final_c,), jnp.float32),
        beta=0.05 * jax.random.normal(k2, (final_c,), jnp.float32),
        wl=(1.0 / np.sqrt(final_c)) * jax.random.normal(k3, (final_c, n_classes), jnp.float32),
        bl=0.01 * jax.random.normal(k4, (n_classes,), jnp.float32),
    )
    return dict(blocks=blocks, clf=clf)


if __name__ == "__main__":
    # Module config: in_shape=(4,16,16), nBlocks=[1,1], nStrides=[1,2], nChannels=[8,8],
    # init_ds=2, inj_pad=0, nClasses=10, density_estimation=False, actnorm=True, nonlin='relu'
    B, C, H, W = 2, 4, 16, 16
    n_classes = 10
    # after init squeeze: (16, 8, 8); block0: stride 1, no input nonlin, in_ch 16, int 8
    # block1: stride 2 (squeeze -> in_ch 64), input nonlin, int 8; final shape (64, 4, 4)
    block_cfgs = [
        dict(in_ch=16, int_ch=8, stride=1, input_nonlin=False),
        dict(in_ch=64, int_ch=8, stride=2, input_nonlin=True),
    ]

    key = jax.random.PRNGKey(0)
    kx, kp = jax.random.split(key)
    x = jax.random.normal(kx, (B, C, H, W), jnp.float32)
    params = make_params(kp, block_cfgs, n_classes)

    # One-time host-side packing into kernel-ready structured matrices.
    packed_inputs, plan, meta = pack_network(
        params, block_cfgs, (B, H // 2, W // 2, 4 * C), n_classes)

    fwd = jax.jit(functools.partial(iresnet_forward_pallas, plan=plan, meta=meta))
    logits, z = fwd(x, packed_inputs)
    logits = jax.block_until_ready(logits)
    z = jax.block_until_ready(z)

    logits_ref, z_ref = forward_ref(x, params, block_cfgs)
    assert logits.shape == (B, n_classes) and z.shape == (B, 64, 4, 4)
    np.testing.assert_allclose(np.asarray(z), np.asarray(z_ref), rtol=1e-2, atol=1e-2)
    np.testing.assert_allclose(np.asarray(logits), np.asarray(logits_ref), rtol=1e-2, atol=1e-2)

    print("KERNEL_OK")
</pallas_src>

<mosaic_0001>
module attributes {stable_mosaic.version = 11 : i64} {
  func.func @kernel(%arg0: memref<16x128xf32, #tpu.memory_space<vmem>>, %arg1: memref<1x128xf32, #tpu.memory_space<vmem>>, %arg2: memref<1x128xf32, #tpu.memory_space<vmem>>, %arg3: memref<2x16x16xf32, #tpu.memory_space<vmem>>, %arg4: memref<3x128x64xf32, #tpu.memory_space<vmem>>, %arg5: memref<1x64xf32, #tpu.memory_space<vmem>>, %arg6: memref<64x64xf32, #tpu.memory_space<vmem>>, %arg7: memref<1x64xf32, #tpu.memory_space<vmem>>, %arg8: memref<3x64x128xf32, #tpu.memory_space<vmem>>, %arg9: memref<1x128xf32, #tpu.memory_space<vmem>>, %arg10: memref<2x8x16xf32, #tpu.memory_space<vmem>>, %arg11: memref<2x128x256xf32, #tpu.memory_space<vmem>>, %arg12: memref<1x256xf32, #tpu.memory_space<vmem>>, %arg13: memref<1x256xf32, #tpu.memory_space<vmem>>, %arg14: memref<2x8x8xf32, #tpu.memory_space<vmem>>, %arg15: memref<3x256x32xf32, #tpu.memory_space<vmem>>, %arg16: memref<1x32xf32, #tpu.memory_space<vmem>>, %arg17: memref<32x32xf32, #tpu.memory_space<vmem>>, %arg18: memref<1x32xf32, #tpu.memory_space<vmem>>, %arg19: memref<3x32x256xf32, #tpu.memory_space<vmem>>, %arg20: memref<1x256xf32, #tpu.memory_space<vmem>>, %arg21: memref<256x64xf32, #tpu.memory_space<vmem>>, %arg22: memref<2x8xf32, #tpu.memory_space<vmem>>, %arg23: memref<1x256xf32, #tpu.memory_space<vmem>>, %arg24: memref<1x256xf32, #tpu.memory_space<vmem>>, %arg25: memref<64x128xf32, #tpu.memory_space<vmem>>, %arg26: memref<1x128xf32, #tpu.memory_space<vmem>>, %arg27: memref<8x256xf32, #tpu.memory_space<vmem>>, %arg28: memref<2x128xf32, #tpu.memory_space<vmem>>) attributes {dimension_semantics = [], scalar_prefetch = 0 : i64, scratch_operands = 0 : i64, tpu.core_type = #tpu.core_type<tc>} {
    %c0 = arith.constant 0 : index
    %c0_0 = arith.constant 0 : index
    %0 = vector.load %arg0[%c0, %c0_0] : memref<16x128xf32, #tpu.memory_space<vmem>>, vector<16x128xf32>
    %c0_1 = arith.constant 0 : index
    %c0_2 = arith.constant 0 : index
    %1 = vector.load %arg1[%c0_1, %c0_2] : memref<1x128xf32, #tpu.memory_space<vmem>>, vector<1x128xf32>
    %2 = vector.broadcast %1 : vector<1x128xf32> to vector<16x128xf32>
    %3 = arith.mulf %0, %2 : vector<16x128xf32>
    %c0_3 = arith.constant 0 : index
    %c0_4 = arith.constant 0 : index
    %4 = vector.load %arg2[%c0_3, %c0_4] : memref<1x128xf32, #tpu.memory_space<vmem>>, vector<1x128xf32>
    %5 = vector.broadcast %4 : vector<1x128xf32> to vector<16x128xf32>
    %6 = arith.addf %3, %5 : vector<16x128xf32>
    %c0_5 = arith.constant 0 : index
    %c0_6 = arith.constant 0 : index
    %c0_7 = arith.constant 0 : index
    %7 = vector.load %arg3[%c0_5, %c0_6, %c0_7] : memref<2x16x16xf32, #tpu.memory_space<vmem>>, vector<1x16x16xf32>
    %8 = vector.shape_cast %7 : vector<1x16x16xf32> to vector<16x16xf32>
    %cst = arith.constant dense<0.000000e+00> : vector<16x128xf32>
    %9 = tpu.matmul %8, %6, %cst {dimension_numbers = #tpu.dot_dimension_numbers<[1], [0], [0], [1], [0, 0, 1, 1], [], []>} : vector<16x16xf32>, vector<16x128xf32>, vector<16x128xf32> -> vector<16x128xf32>
    %c1 = arith.constant 1 : index
    %c0_8 = arith.constant 0 : index
    %c0_9 = arith.constant 0 : index
    %10 = vector.load %arg3[%c1, %c0_8, %c0_9] : memref<2x16x16xf32, #tpu.memory_space<vmem>>, vector<1x16x16xf32>
    %11 = vector.shape_cast %10 : vector<1x16x16xf32> to vector<16x16xf32>
    %cst_10 = arith.constant dense<0.000000e+00> : vector<16x128xf32>
    %12 = tpu.matmul %11, %6, %cst_10 {dimension_numbers = #tpu.dot_dimension_numbers<[1], [0], [0], [1], [0, 0, 1, 1], [], []>} : vector<16x16xf32>, vector<16x128xf32>, vector<16x128xf32> -> vector<16x128xf32>
    %c0_11 = arith.constant 0 : index
    %c0_12 = arith.constant 0 : index
    %c0_13 = arith.constant 0 : index
    %13 = vector.load %arg4[%c0_11, %c0_12, %c0_13] : memref<3x128x64xf32, #tpu.memory_space<vmem>>, vector<1x128x64xf32>
    %14 = vector.shape_cast %13 : vector<1x128x64xf32> to vector<128x64xf32>
    %cst_14 = arith.constant dense<0.000000e+00> : vector<16x64xf32>
    %15 = tpu.matmul %9, %14, %cst_14 {dimension_numbers = #tpu.dot_dimension_numbers<[1], [0], [0], [1], [0, 0, 1, 1], [], []>} : vector<16x128xf32>, vector<128x64xf32>, vector<16x64xf32> -> vector<16x64xf32>
    %c1_15 = arith.constant 1 : index
    %c0_16 = arith.constant 0 : index
    %c0_17 = arith.constant 0 : index
    %16 = vector.load %arg4[%c1_15, %c0_16, %c0_17] : memref<3x128x64xf32, #tpu.memory_space<vmem>>, vector<1x128x64xf32>
    %17 = vector.shape_cast %16 : vector<1x128x64xf32> to vector<128x64xf32>
    %cst_18 = arith.constant dense<0.000000e+00> : vector<16x64xf32>
    %18 = tpu.matmul %6, %17, %cst_18 {dimension_numbers = #tpu.dot_dimension_numbers<[1], [0], [0], [1], [0, 0, 1, 1], [], []>} : vector<16x128xf32>, vector<128x64xf32>, vector<16x64xf32> -> vector<16x64xf32>
    %19 = arith.addf %15, %18 : vector<16x64xf32>
    %c2 = arith.constant 2 : index
    %c0_19 = arith.constant 0 : index
    %c0_20 = arith.constant 0 : index
    %20 = vector.load %arg4[%c2, %c0_19, %c0_20] : memref<3x128x64xf32, #tpu.memory_space<vmem>>, vector<1x128x64xf32>
    %21 = vector.shape_cast %20 : vector<1x128x64xf32> to vector<128x64xf32>
    %cst_21 = arith.constant dense<0.000000e+00> : vector<16x64xf32>
    %22 = tpu.matmul %12, %21, %cst_21 {dimension_numbers = #tpu.dot_dimension_numbers<[1], [0], [0], [1], [0, 0, 1, 1], [], []>} : vector<16x128xf32>, vector<128x64xf32>, vector<16x64xf32> -> vector<16x64xf32>
    %23 = arith.addf %19, %22 : vector<16x64xf32>
    %c0_22 = arith.constant 0 : index
    %c0_23 = arith.constant 0 : index
    %24 = vector.load %arg5[%c0_22, %c0_23] : memref<1x64xf32, #tpu.memory_space<vmem>>, vector<1x64xf32>
    %25 = vector.broadcast %24 : vector<1x64xf32> to vector<16x64xf32>
    %26 = arith.addf %23, %25 : vector<16x64xf32>
    %cst_24 = arith.constant 0.000000e+00 : f32
    %27 = vector.broadcast %cst_24 : f32 to vector<16x64xf32>
    %28 = arith.maximumf %26, %27 : vector<16x64xf32>
    %c0_25 = arith.constant 0 : index
    %c0_26 = arith.constant 0 : index
    %29 = vector.load %arg6[%c0_25, %c0_26] : memref<64x64xf32, #tpu.memory_space<vmem>>, vector<64x64xf32>
    %cst_27 = arith.constant dense<0.000000e+00> : vector<16x64xf32>
    %30 = tpu.matmul %28, %29, %cst_27 {dimension_numbers = #tpu.dot_dimension_numbers<[1], [0], [0], [1], [0, 0, 1, 1], [], []>} : vector<16x64xf32>, vector<64x64xf32>, vector<16x64xf32> -> vector<16x64xf32>
    %c0_28 = arith.constant 0 : index
    %c0_29 = arith.constant 0 : index
    %31 = vector.load %arg7[%c0_28, %c0_29] : memref<1x64xf32, #tpu.memory_space<vmem>>, vector<1x64xf32>
    %32 = vector.broadcast %31 : vector<1x64xf32> to vector<16x64xf32>
    %33 = arith.addf %30, %32 : vector<16x64xf32>
    %cst_30 = arith.constant 0.000000e+00 : f32
    %34 = vector.broadcast %cst_30 : f32 to vector<16x64xf32>
    %35 = arith.maximumf %33, %34 : vector<16x64xf32>
    %c0_31 = arith.constant 0 : index
    %c0_32 = arith.constant 0 : index
    %c0_33 = arith.constant 0 : index
    %36 = vector.load %arg3[%c0_31, %c0_32, %c0_33] : memref<2x16x16xf32, #tpu.memory_space<vmem>>, vector<1x16x16xf32>
    %37 = vector.shape_cast %36 : vector<1x16x16xf32> to vector<16x16xf32>
    %cst_34 = arith.constant dense<0.000000e+00> : vector<16x64xf32>
    %38 = tpu.matmul %37, %35, %cst_34 {dimension_numbers = #tpu.dot_dimension_numbers<[1], [0], [0], [1], [0, 0, 1, 1], [], []>} : vector<16x16xf32>, vector<16x64xf32>, vector<16x64xf32> -> vector<16x64xf32>
    %c1_35 = arith.constant 1 : index
    %c0_36 = arith.constant 0 : index
    %c0_37 = arith.constant 0 : index
    %39 = vector.load %arg3[%c1_35, %c0_36, %c0_37] : memref<2x16x16xf32, #tpu.memory_space<vmem>>, vector<1x16x16xf32>
    %40 = vector.shape_cast %39 : vector<1x16x16xf32> to vector<16x16xf32>
    %cst_38 = arith.constant dense<0.000000e+00> : vector<16x64xf32>
    %41 = tpu.matmul %40, %35, %cst_38 {dimension_numbers = #tpu.dot_dimension_numbers<[1], [0], [0], [1], [0, 0, 1, 1], [], []>} : vector<16x16xf32>, vector<16x64xf32>, vector<16x64xf32> -> vector<16x64xf32>
    %c0_39 = arith.constant 0 : index
    %c0_40 = arith.constant 0 : index
    %c0_41 = arith.constant 0 : index
    %42 = vector.load %arg8[%c0_39, %c0_40, %c0_41] : memref<3x64x128xf32, #tpu.memory_space<vmem>>, vector<1x64x128xf32>
    %43 = vector.shape_cast %42 : vector<1x64x128xf32> to vector<64x128xf32>
    %cst_42 = arith.constant dense<0.000000e+00> : vector<16x128xf32>
    %44 = tpu.matmul %38, %43, %cst_42 {dimension_numbers = #tpu.dot_dimension_numbers<[1], [0], [0], [1], [0, 0, 1, 1], [], []>} : vector<16x64xf32>, vector<64x128xf32>, vector<16x128xf32> -> vector<16x128xf32>
    %c1_43 = arith.constant 1 : index
    %c0_44 = arith.constant 0 : index
    %c0_45 = arith.constant 0 : index
    %45 = vector.load %arg8[%c1_43, %c0_44, %c0_45] : memref<3x64x128xf32, #tpu.memory_space<vmem>>, vector<1x64x128xf32>
    %46 = vector.shape_cast %45 : vector<1x64x128xf32> to vector<64x128xf32>
    %cst_46 = arith.constant dense<0.000000e+00> : vector<16x128xf32>
    %47 = tpu.matmul %35, %46, %cst_46 {dimension_numbers = #tpu.dot_dimension_numbers<[1], [0], [0], [1], [0, 0, 1, 1], [], []>} : vector<16x64xf32>, vector<64x128xf32>, vector<16x128xf32> -> vector<16x128xf32>
    %48 = arith.addf %44, %47 : vector<16x128xf32>
    %c2_47 = arith.constant 2 : index
    %c0_48 = arith.constant 0 : index
    %c0_49 = arith.constant 0 : index
    %49 = vector.load %arg8[%c2_47, %c0_48, %c0_49] : memref<3x64x128xf32, #tpu.memory_space<vmem>>, vector<1x64x128xf32>
    %50 = vector.shape_cast %49 : vector<1x64x128xf32> to vector<64x128xf32>
    %cst_50 = arith.constant dense<0.000000e+00> : vector<16x128xf32>
    %51 = tpu.matmul %41, %50, %cst_50 {dimension_numbers = #tpu.dot_dimension_numbers<[1], [0], [0], [1], [0, 0, 1, 1], [], []>} : vector<16x64xf32>, vector<64x128xf32>, vector<16x128xf32> -> vector<16x128xf32>
    %52 = arith.addf %48, %51 : vector<16x128xf32>
    %c0_51 = arith.constant 0 : index
    %c0_52 = arith.constant 0 : index
    %53 = vector.load %arg9[%c0_51, %c0_52] : memref<1x128xf32, #tpu.memory_space<vmem>>, vector<1x128xf32>
    %54 = vector.broadcast %53 : vector<1x128xf32> to vector<16x128xf32>
    %55 = arith.addf %52, %54 : vector<16x128xf32>
    %56 = arith.addf %6, %55 : vector<16x128xf32>
    %c0_53 = arith.constant 0 : index
    %c0_54 = arith.constant 0 : index
    %c0_55 = arith.constant 0 : index
    %57 = vector.load %arg10[%c0_53, %c0_54, %c0_55] : memref<2x8x16xf32, #tpu.memory_space<vmem>>, vector<1x8x16xf32>
    %58 = vector.shape_cast %57 : vector<1x8x16xf32> to vector<8x16xf32>
    %cst_56 = arith.constant dense<0.000000e+00> : vector<8x128xf32>
    %59 = tpu.matmul %58, %56, %cst_56 {dimension_numbers = #tpu.dot_dimension_numbers<[1], [0], [0], [1], [0, 0, 1, 1], [], []>} : vector<8x16xf32>, vector<16x128xf32>, vector<8x128xf32> -> vector<8x128xf32>
    %c0_57 = arith.constant 0 : index
    %c0_58 = arith.constant 0 : index
    %c0_59 = arith.constant 0 : index
    %60 = vector.load %arg11[%c0_57, %c0_58, %c0_59] : memref<2x128x256xf32, #tpu.memory_space<vmem>>, vector<1x128x256xf32>
    %61 = vector.shape_cast %60 : vector<1x128x256xf32> to vector<128x256xf32>
    %cst_60 = arith.constant dense<0.000000e+00> : vector<8x256xf32>
    %62 = tpu.matmul %59, %61, %cst_60 {dimension_numbers = #tpu.dot_dimension_numbers<[1], [0], [0], [1], [0, 0, 1, 1], [], []>} : vector<8x128xf32>, vector<128x256xf32>, vector<8x256xf32> -> vector<8x256xf32>
    %c1_61 = arith.constant 1 : index
    %c0_62 = arith.constant 0 : index
    %c0_63 = arith.constant 0 : index
    %63 = vector.load %arg10[%c1_61, %c0_62, %c0_63] : memref<2x8x16xf32, #tpu.memory_space<vmem>>, vector<1x8x16xf32>
    %64 = vector.shape_cast %63 : vector<1x8x16xf32> to vector<8x16xf32>
    %cst_64 = arith.constant dense<0.000000e+00> : vector<8x128xf32>
    %65 = tpu.matmul %64, %56, %cst_64 {dimension_numbers = #tpu.dot_dimension_numbers<[1], [0], [0], [1], [0, 0, 1, 1], [], []>} : vector<8x16xf32>, vector<16x128xf32>, vector<8x128xf32> -> vector<8x128xf32>
    %c1_65 = arith.constant 1 : index
    %c0_66 = arith.constant 0 : index
    %c0_67 = arith.constant 0 : index
    %66 = vector.load %arg11[%c1_65, %c0_66, %c0_67] : memref<2x128x256xf32, #tpu.memory_space<vmem>>, vector<1x128x256xf32>
    %67 = vector.shape_cast %66 : vector<1x128x256xf32> to vector<128x256xf32>
    %cst_68 = arith.constant dense<0.000000e+00> : vector<8x256xf32>
    %68 = tpu.matmul %65, %67, %cst_68 {dimension_numbers = #tpu.dot_dimension_numbers<[1], [0], [0], [1], [0, 0, 1, 1], [], []>} : vector<8x128xf32>, vector<128x256xf32>, vector<8x256xf32> -> vector<8x256xf32>
    %69 = arith.addf %62, %68 : vector<8x256xf32>
    %c0_69 = arith.constant 0 : index
    %c0_70 = arith.constant 0 : index
    %70 = vector.load %arg12[%c0_69, %c0_70] : memref<1x256xf32, #tpu.memory_space<vmem>>, vector<1x256xf32>
    %71 = vector.broadcast %70 : vector<1x256xf32> to vector<8x256xf32>
    %72 = arith.mulf %69, %71 : vector<8x256xf32>
    %c0_71 = arith.constant 0 : index
    %c0_72 = arith.constant 0 : index
    %73 = vector.load %arg13[%c0_71, %c0_72] : memref<1x256xf32, #tpu.memory_space<vmem>>, vector<1x256xf32>
    %74 = vector.broadcast %73 : vector<1x256xf32> to vector<8x256xf32>
    %75 = arith.addf %72, %74 : vector<8x256xf32>
    %cst_73 = arith.constant 0.000000e+00 : f32
    %76 = vector.broadcast %cst_73 : f32 to vector<8x256xf32>
    %77 = arith.maximumf %75, %76 : vector<8x256xf32>
    %c0_74 = arith.constant 0 : index
    %c0_75 = arith.constant 0 : index
    %c0_76 = arith.constant 0 : index
    %78 = vector.load %arg14[%c0_74, %c0_75, %c0_76] : memref<2x8x8xf32, #tpu.memory_space<vmem>>, vector<1x8x8xf32>
    %79 = vector.shape_cast %78 : vector<1x8x8xf32> to vector<8x8xf32>
    %cst_77 = arith.constant dense<0.000000e+00> : vector<8x256xf32>
    %80 = tpu.matmul %79, %77, %cst_77 {dimension_numbers = #tpu.dot_dimension_numbers<[1], [0], [0], [1], [0, 0, 1, 1], [], []>} : vector<8x8xf32>, vector<8x256xf32>, vector<8x256xf32> -> vector<8x256xf32>
    %c1_78 = arith.constant 1 : index
    %c0_79 = arith.constant 0 : index
    %c0_80 = arith.constant 0 : index
    %81 = vector.load %arg14[%c1_78, %c0_79, %c0_80] : memref<2x8x8xf32, #tpu.memory_space<vmem>>, vector<1x8x8xf32>
    %82 = vector.shape_cast %81 : vector<1x8x8xf32> to vector<8x8xf32>
    %cst_81 = arith.constant dense<0.000000e+00> : vector<8x256xf32>
    %83 = tpu.matmul %82, %77, %cst_81 {dimension_numbers = #tpu.dot_dimension_numbers<[1], [0], [0], [1], [0, 0, 1, 1], [], []>} : vector<8x8xf32>, vector<8x256xf32>, vector<8x256xf32> -> vector<8x256xf32>
    %c0_82 = arith.constant 0 : index
    %c0_83 = arith.constant 0 : index
    %c0_84 = arith.constant 0 : index
    %84 = vector.load %arg15[%c0_82, %c0_83, %c0_84] : memref<3x256x32xf32, #tpu.memory_space<vmem>>, vector<1x256x32xf32>
    %85 = vector.shape_cast %84 : vector<1x256x32xf32> to vector<256x32xf32>
    %cst_85 = arith.constant dense<0.000000e+00> : vector<8x32xf32>
    %86 = tpu.matmul %80, %85, %cst_85 {dimension_numbers = #tpu.dot_dimension_numbers<[1], [0], [0], [1], [0, 0, 1, 1], [], []>} : vector<8x256xf32>, vector<256x32xf32>, vector<8x32xf32> -> vector<8x32xf32>
    %c1_86 = arith.constant 1 : index
    %c0_87 = arith.constant 0 : index
    %c0_88 = arith.constant 0 : index
    %87 = vector.load %arg15[%c1_86, %c0_87, %c0_88] : memref<3x256x32xf32, #tpu.memory_space<vmem>>, vector<1x256x32xf32>
    %88 = vector.shape_cast %87 : vector<1x256x32xf32> to vector<256x32xf32>
    %cst_89 = arith.constant dense<0.000000e+00> : vector<8x32xf32>
    %89 = tpu.matmul %77, %88, %cst_89 {dimension_numbers = #tpu.dot_dimension_numbers<[1], [0], [0], [1], [0, 0, 1, 1], [], []>} : vector<8x256xf32>, vector<256x32xf32>, vector<8x32xf32> -> vector<8x32xf32>
    %90 = arith.addf %86, %89 : vector<8x32xf32>
    %c2_90 = arith.constant 2 : index
    %c0_91 = arith.constant 0 : index
    %c0_92 = arith.constant 0 : index
    %91 = vector.load %arg15[%c2_90, %c0_91, %c0_92] : memref<3x256x32xf32, #tpu.memory_space<vmem>>, vector<1x256x32xf32>
    %92 = vector.shape_cast %91 : vector<1x256x32xf32> to vector<256x32xf32>
    %cst_93 = arith.constant dense<0.000000e+00> : vector<8x32xf32>
    %93 = tpu.matmul %83, %92, %cst_93 {dimension_numbers = #tpu.dot_dimension_numbers<[1], [0], [0], [1], [0, 0, 1, 1], [], []>} : vector<8x256xf32>, vector<256x32xf32>, vector<8x32xf32> -> vector<8x32xf32>
    %94 = arith.addf %90, %93 : vector<8x32xf32>
    %c0_94 = arith.constant 0 : index
    %c0_95 = arith.constant 0 : index
    %95 = vector.load %arg16[%c0_94, %c0_95] : memref<1x32xf32, #tpu.memory_space<vmem>>, vector<1x32xf32>
    %96 = vector.broadcast %95 : vector<1x32xf32> to vector<8x32xf32>
    %97 = arith.addf %94, %96 : vector<8x32xf32>
    %cst_96 = arith.constant 0.000000e+00 : f32
    %98 = vector.broadcast %cst_96 : f32 to vector<8x32xf32>
    %99 = arith.maximumf %97, %98 : vector<8x32xf32>
    %c0_97 = arith.constant 0 : index
    %c0_98 = arith.constant 0 : index
    %100 = vector.load %arg17[%c0_97, %c0_98] : memref<32x32xf32, #tpu.memory_space<vmem>>, vector<32x32xf32>
    %cst_99 = arith.constant dense<0.000000e+00> : vector<8x32xf32>
    %101 = tpu.matmul %99, %100, %cst_99 {dimension_numbers = #tpu.dot_dimension_numbers<[1], [0], [0], [1], [0, 0, 1, 1], [], []>} : vector<8x32xf32>, vector<32x32xf32>, vector<8x32xf32> -> vector<8x32xf32>
    %c0_100 = arith.constant 0 : index
    %c0_101 = arith.constant 0 : index
    %102 = vector.load %arg18[%c0_100, %c0_101] : memref<1x32xf32, #tpu.memory_space<vmem>>, vector<1x32xf32>
    %103 = vector.broadcast %102 : vector<1x32xf32> to vector<8x32xf32>
    %104 = arith.addf %101, %103 : vector<8x32xf32>
    %cst_102 = arith.constant 0.000000e+00 : f32
    %105 = vector.broadcast %cst_102 : f32 to vector<8x32xf32>
    %106 = arith.maximumf %104, %105 : vector<8x32xf32>
    %c0_103 = arith.constant 0 : index
    %c0_104 = arith.constant 0 : index
    %c0_105 = arith.constant 0 : index
    %107 = vector.load %arg14[%c0_103, %c0_104, %c0_105] : memref<2x8x8xf32, #tpu.memory_space<vmem>>, vector<1x8x8xf32>
    %108 = vector.shape_cast %107 : vector<1x8x8xf32> to vector<8x8xf32>
    %cst_106 = arith.constant dense<0.000000e+00> : vector<8x32xf32>
    %109 = tpu.matmul %108, %106, %cst_106 {dimension_numbers = #tpu.dot_dimension_numbers<[1], [0], [0], [1], [0, 0, 1, 1], [], []>} : vector<8x8xf32>, vector<8x32xf32>, vector<8x32xf32> -> vector<8x32xf32>
    %c1_107 = arith.constant 1 : index
    %c0_108 = arith.constant 0 : index
    %c0_109 = arith.constant 0 : index
    %110 = vector.load %arg14[%c1_107, %c0_108, %c0_109] : memref<2x8x8xf32, #tpu.memory_space<vmem>>, vector<1x8x8xf32>
    %111 = vector.shape_cast %110 : vector<1x8x8xf32> to vector<8x8xf32>
    %cst_110 = arith.constant dense<0.000000e+00> : vector<8x32xf32>
    %112 = tpu.matmul %111, %106, %cst_110 {dimension_numbers = #tpu.dot_dimension_numbers<[1], [0], [0], [1], [0, 0, 1, 1], [], []>} : vector<8x8xf32>, vector<8x32xf32>, vector<8x32xf32> -> vector<8x32xf32>
    %c0_111 = arith.constant 0 : index
    %c0_112 = arith.constant 0 : index
    %c0_113 = arith.constant 0 : index
    %113 = vector.load %arg19[%c0_111, %c0_112, %c0_113] : memref<3x32x256xf32, #tpu.memory_space<vmem>>, vector<1x32x256xf32>
    %114 = vector.shape_cast %113 : vector<1x32x256xf32> to vector<32x256xf32>
    %cst_114 = arith.constant dense<0.000000e+00> : vector<8x256xf32>
    %115 = tpu.matmul %109, %114, %cst_114 {dimension_numbers = #tpu.dot_dimension_numbers<[1], [0], [0], [1], [0, 0, 1, 1], [], []>} : vector<8x32xf32>, vector<32x256xf32>, vector<8x256xf32> -> vector<8x256xf32>
    %c1_115 = arith.constant 1 : index
    %c0_116 = arith.constant 0 : index
    %c0_117 = arith.constant 0 : index
    %116 = vector.load %arg19[%c1_115, %c0_116, %c0_117] : memref<3x32x256xf32, #tpu.memory_space<vmem>>, vector<1x32x256xf32>
    %117 = vector.shape_cast %116 : vector<1x32x256xf32> to vector<32x256xf32>
    %cst_118 = arith.constant dense<0.000000e+00> : vector<8x256xf32>
    %118 = tpu.matmul %106, %117, %cst_118 {dimension_numbers = #tpu.dot_dimension_numbers<[1], [0], [0], [1], [0, 0, 1, 1], [], []>} : vector<8x32xf32>, vector<32x256xf32>, vector<8x256xf32> -> vector<8x256xf32>
    %119 = arith.addf %115, %118 : vector<8x256xf32>
    %c2_119 = arith.constant 2 : index
    %c0_120 = arith.constant 0 : index
    %c0_121 = arith.constant 0 : index
    %120 = vector.load %arg19[%c2_119, %c0_120, %c0_121] : memref<3x32x256xf32, #tpu.memory_space<vmem>>, vector<1x32x256xf32>
    %121 = vector.shape_cast %120 : vector<1x32x256xf32> to vector<32x256xf32>
    %cst_122 = arith.constant dense<0.000000e+00> : vector<8x256xf32>
    %122 = tpu.matmul %112, %121, %cst_122 {dimension_numbers = #tpu.dot_dimension_numbers<[1], [0], [0], [1], [0, 0, 1, 1], [], []>} : vector<8x32xf32>, vector<32x256xf32>, vector<8x256xf32> -> vector<8x256xf32>
    %123 = arith.addf %119, %122 : vector<8x256xf32>
    %c0_123 = arith.constant 0 : index
    %c0_124 = arith.constant 0 : index
    %124 = vector.load %arg20[%c0_123, %c0_124] : memref<1x256xf32, #tpu.memory_space<vmem>>, vector<1x256xf32>
    %125 = vector.broadcast %124 : vector<1x256xf32> to vector<8x256xf32>
    %126 = arith.addf %123, %125 : vector<8x256xf32>
    %127 = arith.addf %75, %126 : vector<8x256xf32>
    %c0_125 = arith.constant 0 : index
    %c0_126 = arith.constant 0 : index
    %128 = vector.load %arg27[%c0_125, %c0_126] : memref<8x256xf32, #tpu.memory_space<vmem>>, vector<8x256xf32>
    tpu.vector_store %arg27[%c0_125, %c0_126], %127 {strides = array<i32>} : memref<8x256xf32, #tpu.memory_space<vmem>>, vector<8x256xf32>,
    %c0_127 = arith.constant 0 : index
    %c0_128 = arith.constant 0 : index
    %129 = vector.load %arg21[%c0_127, %c0_128] : memref<256x64xf32, #tpu.memory_space<vmem>>, vector<256x64xf32>
    %cst_129 = arith.constant dense<0.000000e+00> : vector<8x64xf32>
    %130 = tpu.matmul %127, %129, %cst_129 {dimension_numbers = #tpu.dot_dimension_numbers<[1], [0], [0], [1], [0, 0, 1, 1], [], []>} : vector<8x256xf32>, vector<256x64xf32>, vector<8x64xf32> -> vector<8x64xf32>
    %131 = arith.mulf %127, %127 : vector<8x256xf32>
    %c0_130 = arith.constant 0 : index
    %c0_131 = arith.constant 0 : index
    %132 = vector.load %arg21[%c0_130, %c0_131] : memref<256x64xf32, #tpu.memory_space<vmem>>, vector<256x64xf32>
    %cst_132 = arith.constant dense<0.000000e+00> : vector<8x64xf32>
    %133 = tpu.matmul %131, %132, %cst_132 {dimension_numbers = #tpu.dot_dimension_numbers<[1], [0], [0], [1], [0, 0, 1, 1], [], []>} : vector<8x256xf32>, vector<256x64xf32>, vector<8x64xf32> -> vector<8x64xf32>
    %cst_133 = arith.constant dense<0.000000e+00> : vector<64xf32>
    %134 = vector.multi_reduction <add>, %130, %cst_133 [0] : vector<8x64xf32> to vector<64xf32>
    %135 = vector.shape_cast %134 : vector<64xf32> to vector<1x64xf32>
    %cst_134 = arith.constant 3.125000e-02 : f32
    %136 = vector.broadcast %cst_134 : f32 to vector<1x64xf32>
    %137 = arith.mulf %135, %136 : vector<1x64xf32>
    %cst_135 = arith.constant dense<0.000000e+00> : vector<64xf32>
    %138 = vector.multi_reduction <add>, %133, %cst_135 [0] : vector<8x64xf32> to vector<64xf32>
    %139 = vector.shape_cast %138 : vector<64xf32> to vector<1x64xf32>
    %cst_136 = arith.constant 3.125000e-02 : f32
    %140 = vector.broadcast %cst_136 : f32 to vector<1x64xf32>
    %141 = arith.mulf %139, %140 : vector<1x64xf32>
    %142 = arith.mulf %137, %137 : vector<1x64xf32>
    %143 = arith.subf %141, %142 : vector<1x64xf32>
    %144 = tpu.concatenate %137, %137, %137, %137 in 1 : vector<1x64xf32>, vector<1x64xf32>, vector<1x64xf32>, vector<1x64xf32> -> vector<1x256xf32>
    %145 = tpu.concatenate %143, %143, %143, %143 in 1 : vector<1x64xf32>, vector<1x64xf32>, vector<1x64xf32>, vector<1x64xf32> -> vector<1x256xf32>
    %146 = vector.broadcast %144 : vector<1x256xf32> to vector<8x256xf32>
    %147 = arith.subf %127, %146 : vector<8x256xf32>
    %cst_137 = arith.constant 9.99999974E-6 : f32
    %148 = vector.broadcast %cst_137 : f32 to vector<1x256xf32>
    %149 = arith.addf %145, %148 : vector<1x256xf32>
    %150 = math.rsqrt %149 : vector<1x256xf32>
    %151 = vector.broadcast %150 : vector<1x256xf32> to vector<8x256xf32>
    %152 = arith.mulf %147, %151 : vector<8x256xf32>
    %c0_138 = arith.constant 0 : index
    %c0_139 = arith.constant 0 : index
    %153 = vector.load %arg23[%c0_138, %c0_139] : memref<1x256xf32, #tpu.memory_space<vmem>>, vector<1x256xf32>
    %154 = vector.broadcast %153 : vector<1x256xf32> to vector<8x256xf32>
    %155 = arith.mulf %152, %154 : vector<8x256xf32>
    %c0_140 = arith.constant 0 : index
    %c0_141 = arith.constant 0 : index
    %156 = vector.load %arg24[%c0_140, %c0_141] : memref<1x256xf32, #tpu.memory_space<vmem>>, vector<1x256xf32>
    %157 = vector.broadcast %156 : vector<1x256xf32> to vector<8x256xf32>
    %158 = arith.addf %155, %157 : vector<8x256xf32>
    %cst_142 = arith.constant 0.000000e+00 : f32
    %159 = vector.broadcast %cst_142 : f32 to vector<8x256xf32>
    %160 = arith.maximumf %158, %159 : vector<8x256xf32>
    %c0_143 = arith.constant 0 : index
    %c0_144 = arith.constant 0 : index
    %161 = vector.load %arg22[%c0_143, %c0_144] : memref<2x8xf32, #tpu.memory_space<vmem>>, vector<2x8xf32>
    %c0_145 = arith.constant 0 : index
    %c0_146 = arith.constant 0 : index
    %162 = vector.load %arg21[%c0_145, %c0_146] : memref<256x64xf32, #tpu.memory_space<vmem>>, vector<256x64xf32>
    %cst_147 = arith.constant dense<0.000000e+00> : vector<8x64xf32>
    %163 = tpu.matmul %160, %162, %cst_147 {dimension_numbers = #tpu.dot_dimension_numbers<[1], [0], [0], [1], [0, 0, 1, 1], [], []>} : vector<8x256xf32>, vector<256x64xf32>, vector<8x64xf32> -> vector<8x64xf32>
    %cst_148 = arith.constant dense<0.000000e+00> : vector<2x64xf32>
    %164 = tpu.matmul %161, %163, %cst_148 {dimension_numbers = #tpu.dot_dimension_numbers<[1], [0], [0], [1], [0, 0, 1, 1], [], []>} : vector<2x8xf32>, vector<8x64xf32>, vector<2x64xf32> -> vector<2x64xf32>
    %cst_149 = arith.constant 6.250000e-02 : f32
    %165 = vector.broadcast %cst_149 : f32 to vector<2x64xf32>
    %166 = arith.mulf %164, %165 : vector<2x64xf32>
    %c0_150 = arith.constant 0 : index
    %c0_151 = arith.constant 0 : index
    %167 = vector.load %arg25[%c0_150, %c0_151] : memref<64x128xf32, #tpu.memory_space<vmem>>, vector<64x128xf32>
    %cst_152 = arith.constant dense<0.000000e+00> : vector<2x128xf32>
    %168 = tpu.matmul %166, %167, %cst_152 {dimension_numbers = #tpu.dot_dimension_numbers<[1], [0], [0], [1], [0, 0, 1, 1], [], []>} : vector<2x64xf32>, vector<64x128xf32>, vector<2x128xf32> -> vector<2x128xf32>
    %c0_153 = arith.constant 0 : index
    %c0_154 = arith.constant 0 : index
    %169 = vector.load %arg26[%c0_153, %c0_154] : memref<1x128xf32, #tpu.memory_space<vmem>>, vector<1x128xf32>
    %170 = vector.broadcast %169 : vector<1x128xf32> to vector<2x128xf32>
    %171 = arith.addf %168, %170 : vector<2x128xf32>
    %c0_155 = arith.constant 0 : index
    %c0_156 = arith.constant 0 : index
    %172 = vector.load %arg28[%c0_155, %c0_156] : memref<2x128xf32, #tpu.memory_space<vmem>>, vector<2x128xf32>
    tpu.vector_store %arg28[%c0_155, %c0_156], %171 {strides = array<i32>} : memref<2x128xf32, #tpu.memory_space<vmem>>, vector<2x128xf32>,
    return
  }
}

</mosaic_0001>

<llo_original>
// kernel: iresnet_forward_pallas.1
$region0: #{iresnet_forward_pallas.1}
  #allocation0 [shape = 'u32[]', space=smem, size = 0x4, offset = 0x4, fixed_abs, tag = 'smem constant byte address 0x4 - core index']
  #allocation1 [shape = 'u32[72,128]{1,0:T(1,128)}', space=vmem, size = 0x9000, scoped, tag = 'internal scratch']
  %s0 = inlined_call_operand.vmem [shape: f32[16,128], index: 0, kind: input, shape index: {}]
  %s1 = inlined_call_operand.vmem [shape: f32[1,128], index: 1, kind: input, shape index: {}]
  %s2 = inlined_call_operand.vmem [shape: f32[1,128], index: 2, kind: input, shape index: {}]
  %s3 = inlined_call_operand.vmem [shape: f32[2,16,16], index: 3, kind: input, shape index: {}]
  %s4 = inlined_call_operand.vmem [shape: f32[3,128,64], index: 4, kind: input, shape index: {}]
  %s5 = inlined_call_operand.vmem [shape: f32[1,64], index: 5, kind: input, shape index: {}]
  %s6 = inlined_call_operand.vmem [shape: f32[64,64], index: 6, kind: input, shape index: {}]
  %s7 = inlined_call_operand.vmem [shape: f32[1,64], index: 7, kind: input, shape index: {}]
  %s8 = inlined_call_operand.vmem [shape: f32[3,64,128], index: 8, kind: input, shape index: {}]
  %s9 = inlined_call_operand.vmem [shape: f32[1,128], index: 9, kind: input, shape index: {}]
  %s10 = inlined_call_operand.vmem [shape: f32[2,8,16], index: 10, kind: input, shape index: {}]
  %s11 = inlined_call_operand.vmem [shape: f32[2,128,256], index: 11, kind: input, shape index: {}]
  %s12 = inlined_call_operand.vmem [shape: f32[1,256], index: 12, kind: input, shape index: {}]
  %s13 = inlined_call_operand.vmem [shape: f32[1,256], index: 13, kind: input, shape index: {}]
  %s14 = inlined_call_operand.vmem [shape: f32[2,8,8], index: 14, kind: input, shape index: {}]
  %s15 = inlined_call_operand.vmem [shape: f32[3,256,32], index: 15, kind: input, shape index: {}]
  %s16 = inlined_call_operand.vmem [shape: f32[1,32], index: 16, kind: input, shape index: {}]
  %s17 = inlined_call_operand.vmem [shape: f32[32,32], index: 17, kind: input, shape index: {}]
  %s18 = inlined_call_operand.vmem [shape: f32[1,32], index: 18, kind: input, shape index: {}]
  %s19 = inlined_call_operand.vmem [shape: f32[3,32,256], index: 19, kind: input, shape index: {}]
  %s20 = inlined_call_operand.vmem [shape: f32[1,256], index: 20, kind: input, shape index: {}]
  %s21 = inlined_call_operand.vmem [shape: f32[256,64], index: 21, kind: input, shape index: {}]
  %s22 = inlined_call_operand.vmem [shape: f32[2,8], index: 22, kind: input, shape index: {}]
  %s23 = inlined_call_operand.vmem [shape: f32[1,256], index: 23, kind: input, shape index: {}]
  %s24 = inlined_call_operand.vmem [shape: f32[1,256], index: 24, kind: input, shape index: {}]
  %s25 = inlined_call_operand.vmem [shape: f32[64,128], index: 25, kind: input, shape index: {}]
  %s26 = inlined_call_operand.vmem [shape: f32[1,128], index: 26, kind: input, shape index: {}]
  %s27 = inlined_call_operand.vmem [shape: f32[8,256], index: 27, kind: output, shape index: {0}]
  %s28 = inlined_call_operand.hbm [shape: f32[2,128], index: 28, kind: output, shape index: {1}]
  %29 = xla_tuple %s27, %s28
  %s30 = sld [smem:[#allocation0]]
  $region126: #{iresnet_forward_pallas.1} parent=0
    _
  %s32 = ssub.s32 1, %s30
  %s33 = scalar_select 0, %s32, %s30
  $region1: #{iresnet_forward_pallas.1} parent=0
    #allocation2 [shape = 'u8[1024]{0}', space=vmem, size = 0x400, scoped, tag = 'output window, operand 1, single buffered']
    #allocation3 [shape = 's32[1]{0}', space=sflag, size = 0x4, scoped, tag = 'scoped memory for iresnet_forward_pallas.1']
    %34 = vsyncpa [#allocation3], 0
    // Predicated region
    $region2: #{iresnet_forward_pallas.1} parent=1 // pred_check
      _
    $region3: #{iresnet_forward_pallas.1} parent=1 // pred_check_branch
      %36 = sbr.rel (0) target = $region5
    $region4: #{iresnet_forward_pallas.1} parent=1 // pred_region
      _
    $region5: #{iresnet_forward_pallas.1} parent=1 // pred_fallthru
      _
    // Predicated region
    $region6: #{iresnet_forward_pallas.1} parent=1 // pred_check
      _
    $region7: #{iresnet_forward_pallas.1} parent=1 // pred_check_branch
      %38 = sbr.rel (0) target = $region9
    $region8: #{iresnet_forward_pallas.1} parent=1 // pred_region
      _
    $region9: #{iresnet_forward_pallas.1} parent=1 // pred_fallthru
      _
    // Predicated region
    $region10: #{iresnet_forward_pallas.1} parent=1 // pred_check
      _
    $region11: #{iresnet_forward_pallas.1} parent=1 // pred_check_branch
      %40 = sbr.rel (0) target = $region13
    $region12: #{iresnet_forward_pallas.1} parent=1 // pred_region
      _
    $region13: #{iresnet_forward_pallas.1} parent=1 // pred_fallthru
      _
    // Predicated region
    $region14: #{iresnet_forward_pallas.1} parent=1 // pred_check
      _
    $region15: #{iresnet_forward_pallas.1} parent=1 // pred_check_branch
      %42 = sbr.rel (0) target = $region17
    $region16: #{iresnet_forward_pallas.1} parent=1 // pred_region
      _
    $region17: #{iresnet_forward_pallas.1} parent=1 // pred_fallthru
      _
    // Predicated region
    $region18: #{iresnet_forward_pallas.1} parent=1 // pred_check
      _
    $region19: #{iresnet_forward_pallas.1} parent=1 // pred_check_branch
      %44 = sbr.rel (0) target = $region21
    $region20: #{iresnet_forward_pallas.1} parent=1 // pred_region
      _
    $region21: #{iresnet_forward_pallas.1} parent=1 // pred_fallthru
      _
    // Predicated region
    $region22: #{iresnet_forward_pallas.1} parent=1 // pred_check
      _
    $region23: #{iresnet_forward_pallas.1} parent=1 // pred_check_branch
      %46 = sbr.rel (0) target = $region25
    $region24: #{iresnet_forward_pallas.1} parent=1 // pred_region
      _
    $region25: #{iresnet_forward_pallas.1} parent=1 // pred_fallthru
      _
    // Predicated region
    $region26: #{iresnet_forward_pallas.1} parent=1 // pred_check
      _
    $region27: #{iresnet_forward_pallas.1} parent=1 // pred_check_branch
      %48 = sbr.rel (0) target = $region29
    $region28: #{iresnet_forward_pallas.1} parent=1 // pred_region
      _
    $region29: #{iresnet_forward_pallas.1} parent=1 // pred_fallthru
      _
    // Predicated region
    $region30: #{iresnet_forward_pallas.1} parent=1 // pred_check
      _
    $region31: #{iresnet_forward_pallas.1} parent=1 // pred_check_branch
      %50 = sbr.rel (0) target = $region33
    $region32: #{iresnet_forward_pallas.1} parent=1 // pred_region
      _
    $region33: #{iresnet_forward_pallas.1} parent=1 // pred_fallthru
      _
    // Predicated region
    $region34: #{iresnet_forward_pallas.1} parent=1 // pred_check
      _
    $region35: #{iresnet_forward_pallas.1} parent=1 // pred_check_branch
      %52 = sbr.rel (0) target = $region37
    $region36: #{iresnet_forward_pallas.1} parent=1 // pred_region
      _
    $region37: #{iresnet_forward_pallas.1} parent=1 // pred_fallthru
      _
    // Predicated region
    $region38: #{iresnet_forward_pallas.1} parent=1 // pred_check
      _
    $region39: #{iresnet_forward_pallas.1} parent=1 // pred_check_branch
      %54 = sbr.rel (0) target = $region41
    $region40: #{iresnet_forward_pallas.1} parent=1 // pred_region
      _
    $region41: #{iresnet_forward_pallas.1} parent=1 // pred_fallthru
      _
    // Predicated region
    $region42: #{iresnet_forward_pallas.1} parent=1 // pred_check
      _
    $region43: #{iresnet_forward_pallas.1} parent=1 // pred_check_branch
      %56 = sbr.rel (0) target = $region45
    $region44: #{iresnet_forward_pallas.1} parent=1 // pred_region
      _
    $region45: #{iresnet_forward_pallas.1} parent=1 // pred_fallthru
      _
    // Predicated region
    $region46: #{iresnet_forward_pallas.1} parent=1 // pred_check
      _
    $region47: #{iresnet_forward_pallas.1} parent=1 // pred_check_branch
      %58 = sbr.rel (0) target = $region49
    $region48: #{iresnet_forward_pallas.1} parent=1 // pred_region
      _
    $region49: #{iresnet_forward_pallas.1} parent=1 // pred_fallthru
      _
    // Predicated region
    $region50: #{iresnet_forward_pallas.1} parent=1 // pred_check
      _
    $region51: #{iresnet_forward_pallas.1} parent=1 // pred_check_branch
      %60 = sbr.rel (0) target = $region53
    $region52: #{iresnet_forward_pallas.1} parent=1 // pred_region
      _
    $region53: #{iresnet_forward_pallas.1} parent=1 // pred_fallthru
      _
    // Predicated region
    $region54: #{iresnet_forward_pallas.1} parent=1 // pred_check
      _
    $region55: #{iresnet_forward_pallas.1} parent=1 // pred_check_branch
      %62 = sbr.rel (0) target = $region57
    $region56: #{iresnet_forward_pallas.1} parent=1 // pred_region
      _
    $region57: #{iresnet_forward_pallas.1} parent=1 // pred_fallthru
      _
    // Predicated region
    $region58: #{iresnet_forward_pallas.1} parent=1 // pred_check
      _
    $region59: #{iresnet_forward_pallas.1} parent=1 // pred_check_branch
      %64 = sbr.rel (0) target = $region61
    $region60: #{iresnet_forward_pallas.1} parent=1 // pred_region
      _
    $region61: #{iresnet_forward_pallas.1} parent=1 // pred_fallthru
      _
    // Predicated region
    $region62: #{iresnet_forward_pallas.1} parent=1 // pred_check
      _
    $region63: #{iresnet_forward_pallas.1} parent=1 // pred_check_branch
      %66 = sbr.rel (0) target = $region65
    $region64: #{iresnet_forward_pallas.1} parent=1 // pred_region
      _
    $region65: #{iresnet_forward_pallas.1} parent=1 // pred_fallthru
      _
    // Predicated region
    $region66: #{iresnet_forward_pallas.1} parent=1 // pred_check
      _
    $region67: #{iresnet_forward_pallas.1} parent=1 // pred_check_branch
      %68 = sbr.rel (0) target = $region69
    $region68: #{iresnet_forward_pallas.1} parent=1 // pred_region
      _
    $region69: #{iresnet_forward_pallas.1} parent=1 // pred_fallthru
      _
    // Predicated region
    $region70: #{iresnet_forward_pallas.1} parent=1 // pred_check
      _
    $region71: #{iresnet_forward_pallas.1} parent=1 // pred_check_branch
      %70 = sbr.rel (0) target = $region73
    $region72: #{iresnet_forward_pallas.1} parent=1 // pred_region
      _
    $region73: #{iresnet_forward_pallas.1} parent=1 // pred_fallthru
      _
    // Predicated region
    $region74: #{iresnet_forward_pallas.1} parent=1 // pred_check
      _
    $region75: #{iresnet_forward_pallas.1} parent=1 // pred_check_branch
      %72 = sbr.rel (0) target = $region77
    $region76: #{iresnet_forward_pallas.1} parent=1 // pred_region
      _
    $region77: #{iresnet_forward_pallas.1} parent=1 // pred_fallthru
      _
    // Predicated region
    $region78: #{iresnet_forward_pallas.1} parent=1 // pred_check
      _
    $region79: #{iresnet_forward_pallas.1} parent=1 // pred_check_branch
      %74 = sbr.rel (0) target = $region81
    $region80: #{iresnet_forward_pallas.1} parent=1 // pred_region
      _
    $region81: #{iresnet_forward_pallas.1} parent=1 // pred_fallthru
      _
    // Predicated region
    $region82: #{iresnet_forward_pallas.1} parent=1 // pred_check
      _
    $region83: #{iresnet_forward_pallas.1} parent=1 // pred_check_branch
      %76 = sbr.rel (0) target = $region85
    $region84: #{iresnet_forward_pallas.1} parent=1 // pred_region
      _
    $region85: #{iresnet_forward_pallas.1} parent=1 // pred_fallthru
      _
    // Predicated region
    $region86: #{iresnet_forward_pallas.1} parent=1 // pred_check
      _
    $region87: #{iresnet_forward_pallas.1} parent=1 // pred_check_branch
      %78 = sbr.rel (0) target = $region89
    $region88: #{iresnet_forward_pallas.1} parent=1 // pred_region
      _
    $region89: #{iresnet_forward_pallas.1} parent=1 // pred_fallthru
      _
    // Predicated region
    $region90: #{iresnet_forward_pallas.1} parent=1 // pred_check
      _
    $region91: #{iresnet_forward_pallas.1} parent=1 // pred_check_branch
      %80 = sbr.rel (0) target = $region93
    $region92: #{iresnet_forward_pallas.1} parent=1 // pred_region
      _
    $region93: #{iresnet_forward_pallas.1} parent=1 // pred_fallthru
      _
    // Predicated region
    $region94: #{iresnet_forward_pallas.1} parent=1 // pred_check
      _
    $region95: #{iresnet_forward_pallas.1} parent=1 // pred_check_branch
      %82 = sbr.rel (0) target = $region97
    $region96: #{iresnet_forward_pallas.1} parent=1 // pred_region
      _
    $region97: #{iresnet_forward_pallas.1} parent=1 // pred_fallthru
      _
    // Predicated region
    $region98: #{iresnet_forward_pallas.1} parent=1 // pred_check
      _
    $region99: #{iresnet_forward_pallas.1} parent=1 // pred_check_branch
      %84 = sbr.rel (0) target = $region101
    $region100: #{iresnet_forward_pallas.1} parent=1 // pred_region
      _
    $region101: #{iresnet_forward_pallas.1} parent=1 // pred_fallthru
      _
    // Predicated region
    $region102: #{iresnet_forward_pallas.1} parent=1 // pred_check
      _
    $region103: #{iresnet_forward_pallas.1} parent=1 // pred_check_branch
      %86 = sbr.rel (0) target = $region105
    $region104: #{iresnet_forward_pallas.1} parent=1 // pred_region
      _
    $region105: #{iresnet_forward_pallas.1} parent=1 // pred_fallthru
      _
    // Predicated region
    $region106: #{iresnet_forward_pallas.1} parent=1 // pred_check
      _
    $region107: #{iresnet_forward_pallas.1} parent=1 // pred_check_branch
      %88 = sbr.rel (0) target = $region109
    $region108: #{iresnet_forward_pallas.1} parent=1 // pred_region
      _
    $region109: #{iresnet_forward_pallas.1} parent=1 // pred_fallthru
      _
    %v89 = vld [vmem:[%s0] sm:$0xff]
    %v90 = vld [vmem:[%s0 + $0x8] sm:$0xff]
    %v91 = vld [vmem:[%s1] sm:$0x1]
    %v93 = vperm.slane %v91, 0
    %v95 = vmul.f32 %v89, %v93
    %v96 = vmul.f32 %v90, %v93
    %v97 = vld [vmem:[%s2] sm:$0x1]
    %v99 = vperm.slane %v97, 0
    %v101 = vadd.f32 %v95, %v99
    %v102 = vadd.f32 %v96, %v99
    %v103 = vld [vmem:[%s3] sm:$0xff]
    %v104 = vld [vmem:[%s3 + $0x8] sm:$0xff]
    %vm105 = vcmask 130048
    %v107 = vsel %vm105, %v103, 0
    %v110 = vsel %vm105, %v104, 0
    %112 = vmatpush.msra.mxu0 0.0
    %113 = vmatpush.msra.mxu0 0.0
    %114 = vmatpush.msra.mxu0 0.0
    %115 = vmatpush.msra.mxu0 0.0
    %116 = vmatpush.msra.mxu0 0.0
    %117 = vmatpush.msra.mxu0 0.0
    %118 = vmatpush.msra.mxu0 0.0
    %119 = vmatpush.msra.mxu0 0.0
    %120 = vmatpush.msra.mxu0 0.0
    %121 = vmatpush.msra.mxu0 0.0
    %122 = vmatpush.msra.mxu0 0.0
    %123 = vmatpush.msra.mxu0 0.0
    %124 = vmatpush.msra.mxu0 0.0
    %125 = vmatpush.msra.mxu0 0.0
    %126 = vmatpush.msra.mxu0 %v102
    %127 = vmatpush.msra.mxu0 %v101
    %128 = vmatmul.f32.gmra.mxu0 %v107
    %v129 = vpop.f32.mrf.mxu0
    %v130 = vadd.f32 0.0, %v129
    %131 = vmatmul.f32.gmra.mxu0 %v110
    %v132 = vpop.f32.mrf.mxu0
    %v133 = vadd.f32 0.0, %v132
    %134 = vdwg.mxu0
    %s135 = scalar_lea.vmem %s3, 16
    %v136 = vld [vmem:[%s135] sm:$0xff]
    %v137 = vld [vmem:[%s135 + $0x8] sm:$0xff]
    %v139 = vsel %vm105, %v136, 0
    %v142 = vsel %vm105, %v137, 0
    %144 = vmatpush.msra.mxu0 0.0
    %145 = vmatpush.msra.mxu0 0.0
    %146 = vmatpush.msra.mxu0 0.0
    %147 = vmatpush.msra.mxu0 0.0
    %148 = vmatpush.msra.mxu0 0.0
    %149 = vmatpush.msra.mxu0 0.0
    %150 = vmatpush.msra.mxu0 0.0
    %151 = vmatpush.msra.mxu0 0.0
    %152 = vmatpush.msra.mxu0 0.0
    %153 = vmatpush.msra.mxu0 0.0
    %154 = vmatpush.msra.mxu0 0.0
    %155 = vmatpush.msra.mxu0 0.0
    %156 = vmatpush.msra.mxu0 0.0
    %157 = vmatpush.msra.mxu0 0.0
    %158 = vmatpush.msra.mxu0 %v102
    %159 = vmatpush.msra.mxu0 %v101
    %160 = vmatmul.f32.gmra.mxu0 %v139
    %v161 = vpop.f32.mrf.mxu0
    %v162 = vadd.f32 0.0, %v161
    %163 = vmatmul.f32.gmra.mxu0 %v142
    %v164 = vpop.f32.mrf.mxu0
    %v165 = vadd.f32 0.0, %v164
    %166 = vdwg.mxu0
    %v167 = vld [vmem:[%s4] sm:$0xff]
    %v168 = vld [vmem:[%s4 + $0x8] sm:$0xff]
    %v169 = vld [vmem:[%s4 + $0x10] sm:$0xff]
    %v170 = vld [vmem:[%s4 + $0x18] sm:$0xff]
    %v171 = vld [vmem:[%s4 + $0x20] sm:$0xff]
    %v172 = vld [vmem:[%s4 + $0x28] sm:$0xff]
    %v173 = vld [vmem:[%s4 + $0x30] sm:$0xff]
    %v174 = vld [vmem:[%s4 + $0x38] sm:$0xff]
    %v175 = vld [vmem:[%s4 + $0x40] sm:$0xff]
    %v176 = vld [vmem:[%s4 + $0x48] sm:$0xff]
    %v177 = vld [vmem:[%s4 + $0x50] sm:$0xff]
    %v178 = vld [vmem:[%s4 + $0x58] sm:$0xff]
    %v179 = vld [vmem:[%s4 + $0x60] sm:$0xff]
    %v180 = vld [vmem:[%s4 + $0x68] sm:$0xff]
    %v181 = vld [vmem:[%s4 + $0x70] sm:$0xff]
    %v182 = vld [vmem:[%s4 + $0x78] sm:$0xff]
    %s183 = scalar_lea.vmem %s4, 128
    %v184 = vld [vmem:[%s183] sm:$0xff]
    %v185 = vld [vmem:[%s183 + $0x8] sm:$0xff]
    %v186 = vld [vmem:[%s183 + $0x10] sm:$0xff]
    %v187 = vld [vmem:[%s183 + $0x18] sm:$0xff]
    %v188 = vld [vmem:[%s183 + $0x20] sm:$0xff]
    %v189 = vld [vmem:[%s183 + $0x28] sm:$0xff]
    %v190 = vld [vmem:[%s183 + $0x30] sm:$0xff]
    %v191 = vld [vmem:[%s183 + $0x38] sm:$0xff]
    %v192 = vld [vmem:[%s183 + $0x40] sm:$0xff]
    %v193 = vld [vmem:[%s183 + $0x48] sm:$0xff]
    %v194 = vld [vmem:[%s183 + $0x50] sm:$0xff]
    %v195 = vld [vmem:[%s183 + $0x58] sm:$0xff]
    %v196 = vld [vmem:[%s183 + $0x60] sm:$0xff]
    %v197 = vld [vmem:[%s183 + $0x68] sm:$0xff]
    %v198 = vld [vmem:[%s183 + $0x70] sm:$0xff]
    %v199 = vld [vmem:[%s183 + $0x78] sm:$0xff]
    %200 = vmatpush.msra.mxu0 %v199
    %201 = vmatpush.msra.mxu0 %v198
    %202 = vmatpush.msra.mxu0 %v197
    %203 = vmatpush.msra.mxu0 %v196
    %204 = vmatpush.msra.mxu0 %v195
    %205 = vmatpush.msra.mxu0 %v194
    %206 = vmatpush.msra.mxu0 %v193
    %207 = vmatpush.msra.mxu0 %v192
    %208 = vmatpush.msra.mxu0 %v191
    %209 = vmatpush.msra.mxu0 %v190
    %210 = vmatpush.msra.mxu0 %v189
    %211 = vmatpush.msra.mxu0 %v188
    %212 = vmatpush.msra.mxu0 %v187
    %213 = vmatpush.msra.mxu0 %v186
    %214 = vmatpush.msra.mxu0 %v185
    %215 = vmatpush.msra.mxu0 %v184
    %216 = vmatmul.f32.gmra.mxu0 %v101
    %v217 = vpop.f32.mrf.mxu0
    %v218 = vadd.f32 0.0, %v217
    %219 = vmatmul.f32.gmra.mxu0 %v102
    %v220 = vpop.f32.mrf.mxu0
    %v221 = vadd.f32 0.0, %v220
    %222 = vdwg.mxu0
    %223 = vmatpush.msra.mxu0 %v182
    %224 = vmatpush.msra.mxu0 %v181
    %225 = vmatpush.msra.mxu0 %v180
    %226 = vmatpush.msra.mxu0 %v179
    %227 = vmatpush.msra.mxu0 %v178
    %228 = vmatpush.msra.mxu0 %v177
    %229 = vmatpush.msra.mxu0 %v176
    %230 = vmatpush.msra.mxu0 %v175
    %231 = vmatpush.msra.mxu0 %v174
    %232 = vmatpush.msra.mxu0 %v173
    %233 = vmatpush.msra.mxu0 %v172
    %234 = vmatpush.msra.mxu0 %v171
    %235 = vmatpush.msra.mxu0 %v170
    %236 = vmatpush.msra.mxu0 %v169
    %237 = vmatpush.msra.mxu0 %v168
    %238 = vmatpush.msra.mxu0 %v167
    %239 = vmatmul.f32.gmra.mxu0 %v130
    %v240 = vpop.f32.mrf.mxu0
    %v241 = vadd.f32 %v218, %v240
    %242 = vmatmul.f32.gmra.mxu0 %v133
    %v243 = vpop.f32.mrf.mxu0
    %v244 = vadd.f32 %v221, %v243
    %245 = vdwg.mxu0
    %s246 = scalar_lea.vmem %s4, 256
    %v247 = vld [vmem:[%s246] sm:$0xff]
    %v248 = vld [vmem:[%s246 + $0x8] sm:$0xff]
    %v249 = vld [vmem:[%s246 + $0x10] sm:$0xff]
    %v250 = vld [vmem:[%s246 + $0x18] sm:$0xff]
    %v251 = vld [vmem:[%s246 + $0x20] sm:$0xff]
    %v252 = vld [vmem:[%s246 + $0x28] sm:$0xff]
    %v253 = vld [vmem:[%s246 + $0x30] sm:$0xff]
    %v254 = vld [vmem:[%s246 + $0x38] sm:$0xff]
    %v255 = vld [vmem:[%s246 + $0x40] sm:$0xff]
    %v256 = vld [vmem:[%s246 + $0x48] sm:$0xff]
    %v257 = vld [vmem:[%s246 + $0x50] sm:$0xff]
    %v258 = vld [vmem:[%s246 + $0x58] sm:$0xff]
    %v259 = vld [vmem:[%s246 + $0x60] sm:$0xff]
    %v260 = vld [vmem:[%s246 + $0x68] sm:$0xff]
    %v261 = vld [vmem:[%s246 + $0x70] sm:$0xff]
    %v262 = vld [vmem:[%s246 + $0x78] sm:$0xff]
    %263 = vmatpush.msra.mxu0 %v262
    %264 = vmatpush.msra.mxu0 %v261
    %265 = vmatpush.msra.mxu0 %v260
    %266 = vmatpush.msra.mxu0 %v259
    %267 = vmatpush.msra.mxu0 %v258
    %268 = vmatpush.msra.mxu0 %v257
    %269 = vmatpush.msra.mxu0 %v256
    %270 = vmatpush.msra.mxu0 %v255
    %271 = vmatpush.msra.mxu0 %v254
    %272 = vmatpush.msra.mxu0 %v253
    %273 = vmatpush.msra.mxu0 %v252
    %274 = vmatpush.msra.mxu0 %v251
    %275 = vmatpush.msra.mxu0 %v250
    %276 = vmatpush.msra.mxu0 %v249
    %277 = vmatpush.msra.mxu0 %v248
    %278 = vmatpush.msra.mxu0 %v247
    %279 = vmatmul.f32.gmra.mxu0 %v162
    %v280 = vpop.f32.mrf.mxu0
    %v281 = vadd.f32 0.0, %v280
    %282 = vmatmul.f32.gmra.mxu0 %v165
    %v283 = vpop.f32.mrf.mxu0
    %v284 = vadd.f32 0.0, %v283
    %285 = vdwg.mxu0
    %v286 = vadd.f32 %v241, %v281
    %v287 = vadd.f32 %v244, %v284
    %v288 = vld [vmem:[%s5] sm:$0x1]
    %v290 = vperm.slane %v288, 0
    %v292 = vadd.f32 %v286, %v290
    %v293 = vadd.f32 %v287, %v290
    %v294 = vmax.f32 %v292, 0.0
    %v295 = vmax.f32 %v293, 0.0
    %v296 = vld [vmem:[%s6] sm:$0xff]
    %v297 = vld [vmem:[%s6 + $0x8] sm:$0xff]
    %v298 = vld [vmem:[%s6 + $0x10] sm:$0xff]
    %v299 = vld [vmem:[%s6 + $0x18] sm:$0xff]
    %v300 = vld [vmem:[%s6 + $0x20] sm:$0xff]
    %v301 = vld [vmem:[%s6 + $0x28] sm:$0xff]
    %v302 = vld [vmem:[%s6 + $0x30] sm:$0xff]
    %v303 = vld [vmem:[%s6 + $0x38] sm:$0xff]
    %v304 = vld [vmem:[%s7] sm:$0x1]
    %v306 = vperm.slane %v304, 0
    %vm308 = vcmask 523264
    %v310 = vsel %vm308, %v294, 0
    %v313 = vsel %vm308, %v295, 0
    %315 = vmatpush.msra.mxu0 0.0
    %316 = vmatpush.msra.mxu0 0.0
    %317 = vmatpush.msra.mxu0 0.0
    %318 = vmatpush.msra.mxu0 0.0
    %319 = vmatpush.msra.mxu0 0.0
    %320 = vmatpush.msra.mxu0 0.0
    %321 = vmatpush.msra.mxu0 0.0
    %322 = vmatpush.msra.mxu0 0.0
    %323 = vmatpush.msra.mxu0 %v303
    %324 = vmatpush.msra.mxu0 %v302
    %325 = vmatpush.msra.mxu0 %v301
    %326 = vmatpush.msra.mxu0 %v300
    %327 = vmatpush.msra.mxu0 %v299
    %328 = vmatpush.msra.mxu0 %v298
    %329 = vmatpush.msra.mxu0 %v297
    %330 = vmatpush.msra.mxu0 %v296
    %331 = vmatmul.f32.gmra.mxu0 %v310
    %v332 = vpop.f32.mrf.mxu0
    %v333 = vadd.f32 %v306, %v332
    %334 = vmatmul.f32.gmra.mxu0 %v313
    %v335 = vpop.f32.mrf.mxu0
    %v336 = vadd.f32 %v306, %v335
    %337 = vdwg.mxu0
    %v338 = vmax.f32 %v333, 0.0
    %v339 = vmax.f32 %v336, 0.0
    %340 = vmatpush.msra.mxu0 0.0
    %341 = vmatpush.msra.mxu0 0.0
    %342 = vmatpush.msra.mxu0 0.0
    %343 = vmatpush.msra.mxu0 0.0
    %344 = vmatpush.msra.mxu0 0.0
    %345 = vmatpush.msra.mxu0 0.0
    %346 = vmatpush.msra.mxu0 0.0
    %347 = vmatpush.msra.mxu0 0.0
    %348 = vmatpush.msra.mxu0 0.0
    %349 = vmatpush.msra.mxu0 0.0
    %350 = vmatpush.msra.mxu0 0.0
    %351 = vmatpush.msra.mxu0 0.0
    %352 = vmatpush.msra.mxu0 0.0
    %353 = vmatpush.msra.mxu0 0.0
    %354 = vmatpush.msra.mxu0 %v339
    %355 = vmatpush.msra.mxu0 %v338
    %356 = vmatmul.f32.gmra.mxu0 %v107
    %v357 = vpop.f32.mrf.mxu0
    %v358 = vadd.f32 0.0, %v357
    %359 = vmatmul.f32.gmra.mxu0 %v110
    %v360 = vpop.f32.mrf.mxu0
    %v361 = vadd.f32 0.0, %v360
    %362 = vdwg.mxu0
    %363 = vmatpush.msra.mxu0 0.0
    %364 = vmatpush.msra.mxu0 0.0
    %365 = vmatpush.msra.mxu0 0.0
    %366 = vmatpush.msra.mxu0 0.0
    %367 = vmatpush.msra.mxu0 0.0
    %368 = vmatpush.msra.mxu0 0.0
    %369 = vmatpush.msra.mxu0 0.0
    %370 = vmatpush.msra.mxu0 0.0
    %371 = vmatpush.msra.mxu0 0.0
    %372 = vmatpush.msra.mxu0 0.0
    %373 = vmatpush.msra.mxu0 0.0
    %374 = vmatpush.msra.mxu0 0.0
    %375 = vmatpush.msra.mxu0 0.0
    %376 = vmatpush.msra.mxu0 0.0
    %377 = vmatpush.msra.mxu0 %v339
    %378 = vmatpush.msra.mxu0 %v338
    %379 = vmatmul.f32.gmra.mxu0 %v139
    %v380 = vpop.f32.mrf.mxu0
    %v381 = vadd.f32 0.0, %v380
    %382 = vmatmul.f32.gmra.mxu0 %v142
    %v383 = vpop.f32.mrf.mxu0
    %v384 = vadd.f32 0.0, %v383
    %385 = vdwg.mxu0
    %v386 = vld [vmem:[%s8] sm:$0xff]
    %v387 = vld [vmem:[%s8 + $0x8] sm:$0xff]
    %v388 = vld [vmem:[%s8 + $0x10] sm:$0xff]
    %v389 = vld [vmem:[%s8 + $0x18] sm:$0xff]
    %v390 = vld [vmem:[%s8 + $0x20] sm:$0xff]
    %v391 = vld [vmem:[%s8 + $0x28] sm:$0xff]
    %v392 = vld [vmem:[%s8 + $0x30] sm:$0xff]
    %v393 = vld [vmem:[%s8 + $0x38] sm:$0xff]
    %s394 = scalar_lea.vmem %s8, 64
    %v395 = vld [vmem:[%s394] sm:$0xff]
    %v396 = vld [vmem:[%s394 + $0x8] sm:$0xff]
    %v397 = vld [vmem:[%s394 + $0x10] sm:$0xff]
    %v398 = vld [vmem:[%s394 + $0x18] sm:$0xff]
    %v399 = vld [vmem:[%s394 + $0x20] sm:$0xff]
    %v400 = vld [vmem:[%s394 + $0x28] sm:$0xff]
    %v401 = vld [vmem:[%s394 + $0x30] sm:$0xff]
    %v402 = vld [vmem:[%s394 + $0x38] sm:$0xff]
    %v404 = vsel %vm308, %v338, 0
    %v407 = vsel %vm308, %v339, 0
    %409 = vmatpush.msra.mxu0 0.0
    %410 = vmatpush.msra.mxu0 0.0
    %411 = vmatpush.msra.mxu0 0.0
    %412 = vmatpush.msra.mxu0 0.0
    %413 = vmatpush.msra.mxu0 0.0
    %414 = vmatpush.msra.mxu0 0.0
    %415 = vmatpush.msra.mxu0 0.0
    %416 = vmatpush.msra.mxu0 0.0
    %417 = vmatpush.msra.mxu0 %v402
    %418 = vmatpush.msra.mxu0 %v401
    %419 = vmatpush.msra.mxu0 %v400
    %420 = vmatpush.msra.mxu0 %v399
    %421 = vmatpush.msra.mxu0 %v398
    %422 = vmatpush.msra.mxu0 %v397
    %423 = vmatpush.msra.mxu0 %v396
    %424 = vmatpush.msra.mxu0 %v395
    %425 = vmatmul.f32.gmra.mxu0 %v404
    %v426 = vpop.f32.mrf.mxu0
    %v427 = vadd.f32 0.0, %v426
    %428 = vmatmul.f32.gmra.mxu0 %v407
    %v429 = vpop.f32.mrf.mxu0
    %v430 = vadd.f32 0.0, %v429
    %431 = vdwg.mxu0
    %v433 = vsel %vm308, %v358, 0
    %v436 = vsel %vm308, %v361, 0
    %438 = vmatpush.msra.mxu0 0.0
    %439 = vmatpush.msra.mxu0 0.0
    %440 = vmatpush.msra.mxu0 0.0
    %441 = vmatpush.msra.mxu0 0.0
    %442 = vmatpush.msra.mxu0 0.0
    %443 = vmatpush.msra.mxu0 0.0
    %444 = vmatpush.msra.mxu0 0.0
    %445 = vmatpush.msra.mxu0 0.0
    %446 = vmatpush.msra.mxu0 %v393
    %447 = vmatpush.msra.mxu0 %v392
    %448 = vmatpush.msra.mxu0 %v391
    %449 = vmatpush.msra.mxu0 %v390
    %450 = vmatpush.msra.mxu0 %v389
    %451 = vmatpush.msra.mxu0 %v388
    %452 = vmatpush.msra.mxu0 %v387
    %453 = vmatpush.msra.mxu0 %v386
    %454 = vmatmul.f32.gmra.mxu0 %v433
    %v455 = vpop.f32.mrf.mxu0
    %v456 = vadd.f32 %v427, %v455
    %457 = vmatmul.f32.gmra.mxu0 %v436
    %v458 = vpop.f32.mrf.mxu0
    %v459 = vadd.f32 %v430, %v458
    %460 = vdwg.mxu0
    %s461 = scalar_lea.vmem %s8, 128
    %v462 = vld [vmem:[%s461] sm:$0xff]
    %v463 = vld [vmem:[%s461 + $0x8] sm:$0xff]
    %v464 = vld [vmem:[%s461 + $0x10] sm:$0xff]
    %v465 = vld [vmem:[%s461 + $0x18] sm:$0xff]
    %v466 = vld [vmem:[%s461 + $0x20] sm:$0xff]
    %v467 = vld [vmem:[%s461 + $0x28] sm:$0xff]
    %v468 = vld [vmem:[%s461 + $0x30] sm:$0xff]
    %v469 = vld [vmem:[%s461 + $0x38] sm:$0xff]
    %v471 = vsel %vm308, %v381, 0
    %v474 = vsel %vm308, %v384, 0
    %476 = vmatpush.msra.mxu0 0.0
    %477 = vmatpush.msra.mxu0 0.0
    %478 = vmatpush.msra.mxu0 0.0
    %479 = vmatpush.msra.mxu0 0.0
    %480 = vmatpush.msra.mxu0 0.0
    %481 = vmatpush.msra.mxu0 0.0
    %482 = vmatpush.msra.mxu0 0.0
    %483 = vmatpush.msra.mxu0 0.0
    %484 = vmatpush.msra.mxu0 %v469
    %485 = vmatpush.msra.mxu0 %v468
    %486 = vmatpush.msra.mxu0 %v467
    %487 = vmatpush.msra.mxu0 %v466
    %488 = vmatpush.msra.mxu0 %v465
    %489 = vmatpush.msra.mxu0 %v464
    %490 = vmatpush.msra.mxu0 %v463
    %491 = vmatpush.msra.mxu0 %v462
    %492 = vmatmul.f32.gmra.mxu0 %v471
    %v493 = vpop.f32.mrf.mxu0
    %v494 = vadd.f32 0.0, %v493
    %495 = vmatmul.f32.gmra.mxu0 %v474
    %v496 = vpop.f32.mrf.mxu0
    %v497 = vadd.f32 0.0, %v496
    %498 = vdwg.mxu0
    %v499 = vadd.f32 %v456, %v494
    %v500 = vadd.f32 %v459, %v497
    %v501 = vld [vmem:[%s9] sm:$0x1]
    %v503 = vperm.slane %v501, 0
    %v505 = vadd.f32 %v499, %v503
    %v506 = vadd.f32 %v500, %v503
    %v507 = vadd.f32 %v101, %v505
    %v508 = vadd.f32 %v102, %v506
    %v509 = vld [vmem:[%s10] sm:$0xff]
    %v511 = vsel %vm105, %v509, 0
    %513 = vmatpush.msra.mxu0 0.0
    %514 = vmatpush.msra.mxu0 0.0
    %515 = vmatpush.msra.mxu0 0.0
    %516 = vmatpush.msra.mxu0 0.0
    %517 = vmatpush.msra.mxu0 0.0
    %518 = vmatpush.msra.mxu0 0.0
    %519 = vmatpush.msra.mxu0 0.0
    %520 = vmatpush.msra.mxu0 0.0
    %521 = vmatpush.msra.mxu0 0.0
    %522 = vmatpush.msra.mxu0 0.0
    %523 = vmatpush.msra.mxu0 0.0
    %524 = vmatpush.msra.mxu0 0.0
    %525 = vmatpush.msra.mxu0 0.0
    %526 = vmatpush.msra.mxu0 0.0
    %527 = vmatpush.msra.mxu0 %v508
    %528 = vmatpush.msra.mxu0 %v507
    %529 = vmatmul.f32.gmra.mxu0 %v511
    %v530 = vpop.f32.mrf.mxu0
    %v531 = vadd.f32 0.0, %v530
    %532 = vdwg.mxu0
    %v533 = vld [vmem:[%s11] sm:$0xff]
    %v534 = vld [vmem:[%s11 + $0x8] sm:$0xff]
    %v535 = vld [vmem:[%s11 + $0x10] sm:$0xff]
    %v536 = vld [vmem:[%s11 + $0x18] sm:$0xff]
    %v537 = vld [vmem:[%s11 + $0x20] sm:$0xff]
    %v538 = vld [vmem:[%s11 + $0x28] sm:$0xff]
    %v539 = vld [vmem:[%s11 + $0x30] sm:$0xff]
    %v540 = vld [vmem:[%s11 + $0x38] sm:$0xff]
    %v541 = vld [vmem:[%s11 + $0x40] sm:$0xff]
    %v542 = vld [vmem:[%s11 + $0x48] sm:$0xff]
    %v543 = vld [vmem:[%s11 + $0x50] sm:$0xff]
    %v544 = vld [vmem:[%s11 + $0x58] sm:$0xff]
    %v545 = vld [vmem:[%s11 + $0x60] sm:$0xff]
    %v546 = vld [vmem:[%s11 + $0x68] sm:$0xff]
    %v547 = vld [vmem:[%s11 + $0x70] sm:$0xff]
    %v548 = vld [vmem:[%s11 + $0x78] sm:$0xff]
    %v549 = vld [vmem:[%s11 + $0x80] sm:$0xff]
    %v550 = vld [vmem:[%s11 + $0x88] sm:$0xff]
    %v551 = vld [vmem:[%s11 + $0x90] sm:$0xff]
    %v552 = vld [vmem:[%s11 + $0x98] sm:$0xff]
    %v553 = vld [vmem:[%s11 + $0xa0] sm:$0xff]
    %v554 = vld [vmem:[%s11 + $0xa8] sm:$0xff]
    %v555 = vld [vmem:[%s11 + $0xb0] sm:$0xff]
    %v556 = vld [vmem:[%s11 + $0xb8] sm:$0xff]
    %v557 = vld [vmem:[%s11 + $0xc0] sm:$0xff]
    %v558 = vld [vmem:[%s11 + $0xc8] sm:$0xff]
    %v559 = vld [vmem:[%s11 + $0xd0] sm:$0xff]
    %v560 = vld [vmem:[%s11 + $0xd8] sm:$0xff]
    %v561 = vld [vmem:[%s11 + $0xe0] sm:$0xff]
    %v562 = vld [vmem:[%s11 + $0xe8] sm:$0xff]
    %v563 = vld [vmem:[%s11 + $0xf0] sm:$0xff]
    %v564 = vld [vmem:[%s11 + $0xf8] sm:$0xff]
    %s565 = scalar_lea.vmem %s10, 8
    %v566 = vld [vmem:[%s565] sm:$0xff]
    %v568 = vsel %vm105, %v566, 0
    %570 = vmatpush.msra.mxu0 0.0
    %571 = vmatpush.msra.mxu0 0.0
    %572 = vmatpush.msra.mxu0 0.0
    %573 = vmatpush.msra.mxu0 0.0
    %574 = vmatpush.msra.mxu0 0.0
    %575 = vmatpush.msra.mxu0 0.0
    %576 = vmatpush.msra.mxu0 0.0
    %577 = vmatpush.msra.mxu0 0.0
    %578 = vmatpush.msra.mxu0 0.0
    %579 = vmatpush.msra.mxu0 0.0
    %580 = vmatpush.msra.mxu0 0.0
    %581 = vmatpush.msra.mxu0 0.0
    %582 = vmatpush.msra.mxu0 0.0
    %583 = vmatpush.msra.mxu0 0.0
    %584 = vmatpush.msra.mxu0 %v508
    %585 = vmatpush.msra.mxu0 %v507
    %586 = vmatmul.f32.gmra.mxu0 %v568
    %v587 = vpop.f32.mrf.mxu0
    %v588 = vadd.f32 0.0, %v587
    %589 = vdwg.mxu0
    %s590 = scalar_lea.vmem %s11, 256
    %v591 = vld [vmem:[%s590] sm:$0xff]
    %v592 = vld [vmem:[%s590 + $0x8] sm:$0xff]
    %v593 = vld [vmem:[%s590 + $0x10] sm:$0xff]
    %v594 = vld [vmem:[%s590 + $0x18] sm:$0xff]
    %v595 = vld [vmem:[%s590 + $0x20] sm:$0xff]
    %v596 = vld [vmem:[%s590 + $0x28] sm:$0xff]
    %v597 = vld [vmem:[%s590 + $0x30] sm:$0xff]
    %v598 = vld [vmem:[%s590 + $0x38] sm:$0xff]
    %v599 = vld [vmem:[%s590 + $0x40] sm:$0xff]
    %v600 = vld [vmem:[%s590 + $0x48] sm:$0xff]
    %v601 = vld [vmem:[%s590 + $0x50] sm:$0xff]
    %v602 = vld [vmem:[%s590 + $0x58] sm:$0xff]
    %v603 = vld [vmem:[%s590 + $0x60] sm:$0xff]
    %v604 = vld [vmem:[%s590 + $0x68] sm:$0xff]
    %v605 = vld [vmem:[%s590 + $0x70] sm:$0xff]
    %v606 = vld [vmem:[%s590 + $0x78] sm:$0xff]
    %v607 = vld [vmem:[%s590 + $0x80] sm:$0xff]
    %v608 = vld [vmem:[%s590 + $0x88] sm:$0xff]
    %v609 = vld [vmem:[%s590 + $0x90] sm:$0xff]
    %v610 = vld [vmem:[%s590 + $0x98] sm:$0xff]
    %v611 = vld [vmem:[%s590 + $0xa0] sm:$0xff]
    %v612 = vld [vmem:[%s590 + $0xa8] sm:$0xff]
    %v613 = vld [vmem:[%s590 + $0xb0] sm:$0xff]
    %v614 = vld [vmem:[%s590 + $0xb8] sm:$0xff]
    %v615 = vld [vmem:[%s590 + $0xc0] sm:$0xff]
    %v616 = vld [vmem:[%s590 + $0xc8] sm:$0xff]
    %v617 = vld [vmem:[%s590 + $0xd0] sm:$0xff]
    %v618 = vld [vmem:[%s590 + $0xd8] sm:$0xff]
    %v619 = vld [vmem:[%s590 + $0xe0] sm:$0xff]
    %v620 = vld [vmem:[%s590 + $0xe8] sm:$0xff]
    %v621 = vld [vmem:[%s590 + $0xf0] sm:$0xff]
    %v622 = vld [vmem:[%s590 + $0xf8] sm:$0xff]
    %623 = vmatpush.msra.mxu0 %v621
    %624 = vmatpush.msra.mxu0 %v619
    %625 = vmatpush.msra.mxu0 %v617
    %626 = vmatpush.msra.mxu0 %v615
    %627 = vmatpush.msra.mxu0 %v613
    %628 = vmatpush.msra.mxu0 %v611
    %629 = vmatpush.msra.mxu0 %v609
    %630 = vmatpush.msra.mxu0 %v607
    %631 = vmatpush.msra.mxu0 %v605
    %632 = vmatpush.msra.mxu0 %v603
    %633 = vmatpush.msra.mxu0 %v601
    %634 = vmatpush.msra.mxu0 %v599
    %635 = vmatpush.msra.mxu0 %v597
    %636 = vmatpush.msra.mxu0 %v595
    %637 = vmatpush.msra.mxu0 %v593
    %638 = vmatpush.msra.mxu0 %v591
    %639 = vmatmul.f32.gmra.mxu0 %v588
    %v640 = vpop.f32.mrf.mxu0
    %v641 = vadd.f32 0.0, %v640
    %642 = vdwg.mxu0
    %643 = vmatpush.msra.mxu0 %v622
    %644 = vmatpush.msra.mxu0 %v620
    %645 = vmatpush.msra.mxu0 %v618
    %646 = vmatpush.msra.mxu0 %v616
    %647 = vmatpush.msra.mxu0 %v614
    %648 = vmatpush.msra.mxu0 %v612
    %649 = vmatpush.msra.mxu0 %v610
    %650 = vmatpush.msra.mxu0 %v608
    %651 = vmatpush.msra.mxu0 %v606
    %652 = vmatpush.msra.mxu0 %v604
    %653 = vmatpush.msra.mxu0 %v602
    %654 = vmatpush.msra.mxu0 %v600
    %655 = vmatpush.msra.mxu0 %v598
    %656 = vmatpush.msra.mxu0 %v596
    %657 = vmatpush.msra.mxu0 %v594
    %658 = vmatpush.msra.mxu0 %v592
    %659 = vmatmul.f32.gmra.mxu0 %v588
    %v660 = vpop.f32.mrf.mxu0
    %v661 = vadd.f32 0.0, %v660
    %662 = vdwg.mxu0
    %663 = vmatpush.msra.mxu0 %v563
    %664 = vmatpush.msra.mxu0 %v561
    %665 = vmatpush.msra.mxu0 %v559
    %666 = vmatpush.msra.mxu0 %v557
    %667 = vmatpush.msra.mxu0 %v555
    %668 = vmatpush.msra.mxu0 %v553
    %669 = vmatpush.msra.mxu0 %v551
    %670 = vmatpush.msra.mxu0 %v549
    %671 = vmatpush.msra.mxu0 %v547
    %672 = vmatpush.msra.mxu0 %v545
    %673 = vmatpush.msra.mxu0 %v543
    %674 = vmatpush.msra.mxu0 %v541
    %675 = vmatpush.msra.mxu0 %v539
    %676 = vmatpush.msra.mxu0 %v537
    %677 = vmatpush.msra.mxu0 %v535
    %678 = vmatpush.msra.mxu0 %v533
    %679 = vmatmul.f32.gmra.mxu0 %v531
    %v680 = vpop.f32.mrf.mxu0
    %v681 = vadd.f32 %v641, %v680
    %682 = vdwg.mxu0
    %683 = vmatpush.msra.mxu0 %v564
    %684 = vmatpush.msra.mxu0 %v562
    %685 = vmatpush.msra.mxu0 %v560
    %686 = vmatpush.msra.mxu0 %v558
    %687 = vmatpush.msra.mxu0 %v556
    %688 = vmatpush.msra.mxu0 %v554
    %689 = vmatpush.msra.mxu0 %v552
    %690 = vmatpush.msra.mxu0 %v550
    %691 = vmatpush.msra.mxu0 %v548
    %692 = vmatpush.msra.mxu0 %v546
    %693 = vmatpush.msra.mxu0 %v544
    %694 = vmatpush.msra.mxu0 %v542
    %695 = vmatpush.msra.mxu0 %v540
    %696 = vmatpush.msra.mxu0 %v538
    %697 = vmatpush.msra.mxu0 %v536
    %698 = vmatpush.msra.mxu0 %v534
    %699 = vmatmul.f32.gmra.mxu0 %v531
    %v700 = vpop.f32.mrf.mxu0
    %v701 = vadd.f32 %v661, %v700
    %702 = vdwg.mxu0
    %v703 = vld [vmem:[%s12] sm:$0x3]
    %v705 = vperm.slane %v703, 0
    %v706 = vperm.slane %v703, 1
    %v709 = vmul.f32 %v681, %v705
    %v710 = vmul.f32 %v701, %v706
    %v711 = vld [vmem:[%s13] sm:$0x3]
    %v713 = vperm.slane %v711, 0
    %v714 = vperm.slane %v711, 1
    %v717 = vadd.f32 %v709, %v713
    %v718 = vadd.f32 %v710, %v714
    %v719 = vmax.f32 %v717, 0.0
    %v720 = vmax.f32 %v718, 0.0
    %v721 = vld [vmem:[%s14] sm:$0xff]
    %vm722 = vcmask 64512
    %v724 = vsel %vm722, %v721, 0
    %726 = vmatpush.msra.mxu0 0.0
    %727 = vmatpush.msra.mxu0 0.0
    %728 = vmatpush.msra.mxu0 0.0
    %729 = vmatpush.msra.mxu0 0.0
    %730 = vmatpush.msra.mxu0 0.0
    %731 = vmatpush.msra.mxu0 0.0
    %732 = vmatpush.msra.mxu0 0.0
    %733 = vmatpush.msra.mxu0 0.0
    %734 = vmatpush.msra.mxu0 0.0
    %735 = vmatpush.msra.mxu0 0.0
    %736 = vmatpush.msra.mxu0 0.0
    %737 = vmatpush.msra.mxu0 0.0
    %738 = vmatpush.msra.mxu0 0.0
    %739 = vmatpush.msra.mxu0 0.0
    %740 = vmatpush.msra.mxu0 0.0
    %741 = vmatpush.msra.mxu0 %v719
    %742 = vmatmul.f32.gmra.mxu0 %v724
    %v743 = vpop.f32.mrf.mxu0
    %v744 = vadd.f32 0.0, %v743
    %745 = vdwg.mxu0
    %746 = vmatpush.msra.mxu0 0.0
    %747 = vmatpush.msra.mxu0 0.0
    %748 = vmatpush.msra.mxu0 0.0
    %749 = vmatpush.msra.mxu0 0.0
    %750 = vmatpush.msra.mxu0 0.0
    %751 = vmatpush.msra.mxu0 0.0
    %752 = vmatpush.msra.mxu0 0.0
    %753 = vmatpush.msra.mxu0 0.0
    %754 = vmatpush.msra.mxu0 0.0
    %755 = vmatpush.msra.mxu0 0.0
    %756 = vmatpush.msra.mxu0 0.0
    %757 = vmatpush.msra.mxu0 0.0
    %758 = vmatpush.msra.mxu0 0.0
    %759 = vmatpush.msra.mxu0 0.0
    %760 = vmatpush.msra.mxu0 0.0
    %761 = vmatpush.msra.mxu0 %v720
    %762 = vmatmul.f32.gmra.mxu0 %v724
    %v763 = vpop.f32.mrf.mxu0
    %v764 = vadd.f32 0.0, %v763
    %765 = vdwg.mxu0
    %s766 = scalar_lea.vmem %s14, 8
    %v767 = vld [vmem:[%s766] sm:$0xff]
    %v769 = vsel %vm722, %v767, 0
    %771 = vmatpush.msra.mxu0 0.0
    %772 = vmatpush.msra.mxu0 0.0
    %773 = vmatpush.msra.mxu0 0.0
    %774 = vmatpush.msra.mxu0 0.0
    %775 = vmatpush.msra.mxu0 0.0
    %776 = vmatpush.msra.mxu0 0.0
    %777 = vmatpush.msra.mxu0 0.0
    %778 = vmatpush.msra.mxu0 0.0
    %779 = vmatpush.msra.mxu0 0.0
    %780 = vmatpush.msra.mxu0 0.0
    %781 = vmatpush.msra.mxu0 0.0
    %782 = vmatpush.msra.mxu0 0.0
    %783 = vmatpush.msra.mxu0 0.0
    %784 = vmatpush.msra.mxu0 0.0
    %785 = vmatpush.msra.mxu0 0.0
    %786 = vmatpush.msra.mxu0 %v719
    %787 = vmatmul.f32.gmra.mxu0 %v769
    %v788 = vpop.f32.mrf.mxu0
    %v789 = vadd.f32 0.0, %v788
    %790 = vdwg.mxu0
    %791 = vmatpush.msra.mxu0 0.0
    %792 = vmatpush.msra.mxu0 0.0
    %793 = vmatpush.msra.mxu0 0.0
    %794 = vmatpush.msra.mxu0 0.0
    %795 = vmatpush.msra.mxu0 0.0
    %796 = vmatpush.msra.mxu0 0.0
    %797 = vmatpush.msra.mxu0 0.0
    %798 = vmatpush.msra.mxu0 0.0
    %799 = vmatpush.msra.mxu0 0.0
    %800 = vmatpush.msra.mxu0 0.0
    %801 = vmatpush.msra.mxu0 0.0
    %802 = vmatpush.msra.mxu0 0.0
    %803 = vmatpush.msra.mxu0 0.0
    %804 = vmatpush.msra.mxu0 0.0
    %805 = vmatpush.msra.mxu0 0.0
    %806 = vmatpush.msra.mxu0 %v720
    %807 = vmatmul.f32.gmra.mxu0 %v769
    %v808 = vpop.f32.mrf.mxu0
    %v809 = vadd.f32 0.0, %v808
    %810 = vdwg.mxu0
    %v811 = vld [vmem:[%s15] sm:$0xff]
    %v812 = vld [vmem:[%s15 + $0x8] sm:$0xff]
    %v813 = vld [vmem:[%s15 + $0x10] sm:$0xff]
    %v814 = vld [vmem:[%s15 + $0x18] sm:$0xff]
    %v815 = vld [vmem:[%s15 + $0x20] sm:$0xff]
    %v816 = vld [vmem:[%s15 + $0x28] sm:$0xff]
    %v817 = vld [vmem:[%s15 + $0x30] sm:$0xff]
    %v818 = vld [vmem:[%s15 + $0x38] sm:$0xff]
    %v819 = vld [vmem:[%s15 + $0x40] sm:$0xff]
    %v820 = vld [vmem:[%s15 + $0x48] sm:$0xff]
    %v821 = vld [vmem:[%s15 + $0x50] sm:$0xff]
    %v822 = vld [vmem:[%s15 + $0x58] sm:$0xff]
    %v823 = vld [vmem:[%s15 + $0x60] sm:$0xff]
    %v824 = vld [vmem:[%s15 + $0x68] sm:$0xff]
    %v825 = vld [vmem:[%s15 + $0x70] sm:$0xff]
    %v826 = vld [vmem:[%s15 + $0x78] sm:$0xff]
    %v827 = vld [vmem:[%s15 + $0x80] sm:$0xff]
    %v828 = vld [vmem:[%s15 + $0x88] sm:$0xff]
    %v829 = vld [vmem:[%s15 + $0x90] sm:$0xff]
    %v830 = vld [vmem:[%s15 + $0x98] sm:$0xff]
    %v831 = vld [vmem:[%s15 + $0xa0] sm:$0xff]
    %v832 = vld [vmem:[%s15 + $0xa8] sm:$0xff]
    %v833 = vld [vmem:[%s15 + $0xb0] sm:$0xff]
    %v834 = vld [vmem:[%s15 + $0xb8] sm:$0xff]
    %v835 = vld [vmem:[%s15 + $0xc0] sm:$0xff]
    %v836 = vld [vmem:[%s15 + $0xc8] sm:$0xff]
    %v837 = vld [vmem:[%s15 + $0xd0] sm:$0xff]
    %v838 = vld [vmem:[%s15 + $0xd8] sm:$0xff]
    %v839 = vld [vmem:[%s15 + $0xe0] sm:$0xff]
    %v840 = vld [vmem:[%s15 + $0xe8] sm:$0xff]
    %v841 = vld [vmem:[%s15 + $0xf0] sm:$0xff]
    %v842 = vld [vmem:[%s15 + $0xf8] sm:$0xff]
    %s843 = scalar_lea.vmem %s15, 256
    %v844 = vld [vmem:[%s843] sm:$0xff]
    %v845 = vld [vmem:[%s843 + $0x8] sm:$0xff]
    %v846 = vld [vmem:[%s843 + $0x10] sm:$0xff]
    %v847 = vld [vmem:[%s843 + $0x18] sm:$0xff]
    %v848 = vld [vmem:[%s843 + $0x20] sm:$0xff]
    %v849 = vld [vmem:[%s843 + $0x28] sm:$0xff]
    %v850 = vld [vmem:[%s843 + $0x30] sm:$0xff]
    %v851 = vld [vmem:[%s843 + $0x38] sm:$0xff]
    %v852 = vld [vmem:[%s843 + $0x40] sm:$0xff]
    %v853 = vld [vmem:[%s843 + $0x48] sm:$0xff]
    %v854 = vld [vmem:[%s843 + $0x50] sm:$0xff]
    %v855 = vld [vmem:[%s843 + $0x58] sm:$0xff]
    %v856 = vld [vmem:[%s843 + $0x60] sm:$0xff]
    %v857 = vld [vmem:[%s843 + $0x68] sm:$0xff]
    %v858 = vld [vmem:[%s843 + $0x70] sm:$0xff]
    %v859 = vld [vmem:[%s843 + $0x78] sm:$0xff]
    %v860 = vld [vmem:[%s843 + $0x80] sm:$0xff]
    %v861 = vld [vmem:[%s843 + $0x88] sm:$0xff]
    %v862 = vld [vmem:[%s843 + $0x90] sm:$0xff]
    %v863 = vld [vmem:[%s843 + $0x98] sm:$0xff]
    %v864 = vld [vmem:[%s843 + $0xa0] sm:$0xff]
    %v865 = vld [vmem:[%s843 + $0xa8] sm:$0xff]
    %v866 = vld [vmem:[%s843 + $0xb0] sm:$0xff]
    %v867 = vld [vmem:[%s843 + $0xb8] sm:$0xff]
    %v868 = vld [vmem:[%s843 + $0xc0] sm:$0xff]
    %v869 = vld [vmem:[%s843 + $0xc8] sm:$0xff]
    %v870 = vld [vmem:[%s843 + $0xd0] sm:$0xff]
    %v871 = vld [vmem:[%s843 + $0xd8] sm:$0xff]
    %v872 = vld [vmem:[%s843 + $0xe0] sm:$0xff]
    %v873 = vld [vmem:[%s843 + $0xe8] sm:$0xff]
    %v874 = vld [vmem:[%s843 + $0xf0] sm:$0xff]
    %v875 = vld [vmem:[%s843 + $0xf8] sm:$0xff]
    %876 = vmatpush.msra.mxu0 %v859
    %877 = vmatpush.msra.mxu0 %v858
    %878 = vmatpush.msra.mxu0 %v857
    %879 = vmatpush.msra.mxu0 %v856
    %880 = vmatpush.msra.mxu0 %v855
    %881 = vmatpush.msra.mxu0 %v854
    %882 = vmatpush.msra.mxu0 %v853
    %883 = vmatpush.msra.mxu0 %v852
    %884 = vmatpush.msra.mxu0 %v851
    %885 = vmatpush.msra.mxu0 %v850
    %886 = vmatpush.msra.mxu0 %v849
    %887 = vmatpush.msra.mxu0 %v848
    %888 = vmatpush.msra.mxu0 %v847
    %889 = vmatpush.msra.mxu0 %v846
    %890 = vmatpush.msra.mxu0 %v845
    %891 = vmatpush.msra.mxu0 %v844
    %892 = vmatmul.f32.gmra.mxu0 %v719
    %v893 = vpop.f32.mrf.mxu0
    %v894 = vadd.f32 0.0, %v893
    %895 = vdwg.mxu0
    %896 = vmatpush.msra.mxu0 %v875
    %897 = vmatpush.msra.mxu0 %v874
    %898 = vmatpush.msra.mxu0 %v873
    %899 = vmatpush.msra.mxu0 %v872
    %900 = vmatpush.msra.mxu0 %v871
    %901 = vmatpush.msra.mxu0 %v870
    %902 = vmatpush.msra.mxu0 %v869
    %903 = vmatpush.msra.mxu0 %v868
    %904 = vmatpush.msra.mxu0 %v867
    %905 = vmatpush.msra.mxu0 %v866
    %906 = vmatpush.msra.mxu0 %v865
    %907 = vmatpush.msra.mxu0 %v864
    %908 = vmatpush.msra.mxu0 %v863
    %909 = vmatpush.msra.mxu0 %v862
    %910 = vmatpush.msra.mxu0 %v861
    %911 = vmatpush.msra.mxu0 %v860
    %912 = vmatmul.f32.gmra.mxu0 %v720
    %v913 = vpop.f32.mrf.mxu0
    %v914 = vadd.f32 %v894, %v913
    %915 = vdwg.mxu0
    %916 = vmatpush.msra.mxu0 %v826
    %917 = vmatpush.msra.mxu0 %v825
    %918 = vmatpush.msra.mxu0 %v824
    %919 = vmatpush.msra.mxu0 %v823
    %920 = vmatpush.msra.mxu0 %v822
    %921 = vmatpush.msra.mxu0 %v821
    %922 = vmatpush.msra.mxu0 %v820
    %923 = vmatpush.msra.mxu0 %v819
    %924 = vmatpush.msra.mxu0 %v818
    %925 = vmatpush.msra.mxu0 %v817
    %926 = vmatpush.msra.mxu0 %v816
    %927 = vmatpush.msra.mxu0 %v815
    %928 = vmatpush.msra.mxu0 %v814
    %929 = vmatpush.msra.mxu0 %v813
    %930 = vmatpush.msra.mxu0 %v812
    %931 = vmatpush.msra.mxu0 %v811
    %932 = vmatmul.f32.gmra.mxu0 %v744
    %v933 = vpop.f32.mrf.mxu0
    %v934 = vadd.f32 %v914, %v933
    %935 = vdwg.mxu0
    %936 = vmatpush.msra.mxu0 %v842
    %937 = vmatpush.msra.mxu0 %v841
    %938 = vmatpush.msra.mxu0 %v840
    %939 = vmatpush.msra.mxu0 %v839
    %940 = vmatpush.msra.mxu0 %v838
    %941 = vmatpush.msra.mxu0 %v837
    %942 = vmatpush.msra.mxu0 %v836
    %943 = vmatpush.msra.mxu0 %v835
    %944 = vmatpush.msra.mxu0 %v834
    %945 = vmatpush.msra.mxu0 %v833
    %946 = vmatpush.msra.mxu0 %v832
    %947 = vmatpush.msra.mxu0 %v831
    %948 = vmatpush.msra.mxu0 %v830
    %949 = vmatpush.msra.mxu0 %v829
    %950 = vmatpush.msra.mxu0 %v828
    %951 = vmatpush.msra.mxu0 %v827
    %952 = vmatmul.f32.gmra.mxu0 %v764
    %v953 = vpop.f32.mrf.mxu0
    %v954 = vadd.f32 %v934, %v953
    %955 = vdwg.mxu0
    %s956 = scalar_lea.vmem %s15, 512
    %v957 = vld [vmem:[%s956] sm:$0xff]
    %v958 = vld [vmem:[%s956 + $0x8] sm:$0xff]
    %v959 = vld [vmem:[%s956 + $0x10] sm:$0xff]
    %v960 = vld [vmem:[%s956 + $0x18] sm:$0xff]
    %v961 = vld [vmem:[%s956 + $0x20] sm:$0xff]
    %v962 = vld [vmem:[%s956 + $0x28] sm:$0xff]
    %v963 = vld [vmem:[%s956 + $0x30] sm:$0xff]
    %v964 = vld [vmem:[%s956 + $0x38] sm:$0xff]
    %v965 = vld [vmem:[%s956 + $0x40] sm:$0xff]
    %v966 = vld [vmem:[%s956 + $0x48] sm:$0xff]
    %v967 = vld [vmem:[%s956 + $0x50] sm:$0xff]
    %v968 = vld [vmem:[%s956 + $0x58] sm:$0xff]
    %v969 = vld [vmem:[%s956 + $0x60] sm:$0xff]
    %v970 = vld [vmem:[%s956 + $0x68] sm:$0xff]
    %v971 = vld [vmem:[%s956 + $0x70] sm:$0xff]
    %v972 = vld [vmem:[%s956 + $0x78] sm:$0xff]
    %v973 = vld [vmem:[%s956 + $0x80] sm:$0xff]
    %v974 = vld [vmem:[%s956 + $0x88] sm:$0xff]
    %v975 = vld [vmem:[%s956 + $0x90] sm:$0xff]
    %v976 = vld [vmem:[%s956 + $0x98] sm:$0xff]
    %v977 = vld [vmem:[%s956 + $0xa0] sm:$0xff]
    %v978 = vld [vmem:[%s956 + $0xa8] sm:$0xff]
    %v979 = vld [vmem:[%s956 + $0xb0] sm:$0xff]
    %v980 = vld [vmem:[%s956 + $0xb8] sm:$0xff]
    %v981 = vld [vmem:[%s956 + $0xc0] sm:$0xff]
    %v982 = vld [vmem:[%s956 + $0xc8] sm:$0xff]
    %v983 = vld [vmem:[%s956 + $0xd0] sm:$0xff]
    %v984 = vld [vmem:[%s956 + $0xd8] sm:$0xff]
    %v985 = vld [vmem:[%s956 + $0xe0] sm:$0xff]
    %v986 = vld [vmem:[%s956 + $0xe8] sm:$0xff]
    %v987 = vld [vmem:[%s956 + $0xf0] sm:$0xff]
    %v988 = vld [vmem:[%s956 + $0xf8] sm:$0xff]
    %989 = vmatpush.msra.mxu0 %v972
    %990 = vmatpush.msra.mxu0 %v971
    %991 = vmatpush.msra.mxu0 %v970
    %992 = vmatpush.msra.mxu0 %v969
    %993 = vmatpush.msra.mxu0 %v968
    %994 = vmatpush.msra.mxu0 %v967
    %995 = vmatpush.msra.mxu0 %v966
    %996 = vmatpush.msra.mxu0 %v965
    %997 = vmatpush.msra.mxu0 %v964
    %998 = vmatpush.msra.mxu0 %v963
    %999 = vmatpush.msra.mxu0 %v962
    %1000 = vmatpush.msra.mxu0 %v961
    %1001 = vmatpush.msra.mxu0 %v960
    %1002 = vmatpush.msra.mxu0 %v959
    %1003 = vmatpush.msra.mxu0 %v958
    %1004 = vmatpush.msra.mxu0 %v957
    %1005 = vmatmul.f32.gmra.mxu0 %v789
    %v1006 = vpop.f32.mrf.mxu0
    %v1007 = vadd.f32 0.0, %v1006
    %1008 = vdwg.mxu0
    %1009 = vmatpush.msra.mxu0 %v988
    %1010 = vmatpush.msra.mxu0 %v987
    %1011 = vmatpush.msra.mxu0 %v986
    %1012 = vmatpush.msra.mxu0 %v985
    %1013 = vmatpush.msra.mxu0 %v984
    %1014 = vmatpush.msra.mxu0 %v983
    %1015 = vmatpush.msra.mxu0 %v982
    %1016 = vmatpush.msra.mxu0 %v981
    %1017 = vmatpush.msra.mxu0 %v980
    %1018 = vmatpush.msra.mxu0 %v979
    %1019 = vmatpush.msra.mxu0 %v978
    %1020 = vmatpush.msra.mxu0 %v977
    %1021 = vmatpush.msra.mxu0 %v976
    %1022 = vmatpush.msra.mxu0 %v975
    %1023 = vmatpush.msra.mxu0 %v974
    %1024 = vmatpush.msra.mxu0 %v973
    %1025 = vmatmul.f32.gmra.mxu0 %v809
    %v1026 = vpop.f32.mrf.mxu0
    %v1027 = vadd.f32 %v1007, %v1026
    %1028 = vdwg.mxu0
    %v1029 = vadd.f32 %v954, %v1027
    %v1030 = vld [vmem:[%s16] sm:$0x1]
    %v1032 = vperm.slane %v1030, 0
    %v1034 = vadd.f32 %v1029, %v1032
    %v1035 = vmax.f32 %v1034, 0.0
    %v1036 = vld [vmem:[%s17] sm:$0xff]
    %v1037 = vld [vmem:[%s17 + $0x8] sm:$0xff]
    %v1038 = vld [vmem:[%s17 + $0x10] sm:$0xff]
    %v1039 = vld [vmem:[%s17 + $0x18] sm:$0xff]
    %v1040 = vld [vmem:[%s18] sm:$0x1]
    %v1042 = vperm.slane %v1040, 0
    %vm1044 = vcmask 261120
    %v1046 = vsel %vm1044, %v1035, 0
    %1048 = vmatpush.msra.mxu0 0.0
    %1049 = vmatpush.msra.mxu0 0.0
    %1050 = vmatpush.msra.mxu0 0.0
    %1051 = vmatpush.msra.mxu0 0.0
    %1052 = vmatpush.msra.mxu0 0.0
    %1053 = vmatpush.msra.mxu0 0.0
    %1054 = vmatpush.msra.mxu0 0.0
    %1055 = vmatpush.msra.mxu0 0.0
    %1056 = vmatpush.msra.mxu0 0.0
    %1057 = vmatpush.msra.mxu0 0.0
    %1058 = vmatpush.msra.mxu0 0.0
    %1059 = vmatpush.msra.mxu0 0.0
    %1060 = vmatpush.msra.mxu0 %v1039
    %1061 = vmatpush.msra.mxu0 %v1038
    %1062 = vmatpush.msra.mxu0 %v1037
    %1063 = vmatpush.msra.mxu0 %v1036
    %1064 = vmatmul.f32.gmra.mxu0 %v1046
    %v1065 = vpop.f32.mrf.mxu0
    %v1066 = vadd.f32 %v1042, %v1065
    %1067 = vdwg.mxu0
    %v1068 = vmax.f32 %v1066, 0.0
    %1069 = vmatpush.msra.mxu0 0.0
    %1070 = vmatpush.msra.mxu0 0.0
    %1071 = vmatpush.msra.mxu0 0.0
    %1072 = vmatpush.msra.mxu0 0.0
    %1073 = vmatpush.msra.mxu0 0.0
    %1074 = vmatpush.msra.mxu0 0.0
    %1075 = vmatpush.msra.mxu0 0.0
    %1076 = vmatpush.msra.mxu0 0.0
    %1077 = vmatpush.msra.mxu0 0.0
    %1078 = vmatpush.msra.mxu0 0.0
    %1079 = vmatpush.msra.mxu0 0.0
    %1080 = vmatpush.msra.mxu0 0.0
    %1081 = vmatpush.msra.mxu0 0.0
    %1082 = vmatpush.msra.mxu0 0.0
    %1083 = vmatpush.msra.mxu0 0.0
    %1084 = vmatpush.msra.mxu0 %v1068
    %1085 = vmatmul.f32.gmra.mxu0 %v724
    %v1086 = vpop.f32.mrf.mxu0
    %v1087 = vadd.f32 0.0, %v1086
    %1088 = vdwg.mxu0
    %1089 = vmatpush.msra.mxu0 0.0
    %1090 = vmatpush.msra.mxu0 0.0
    %1091 = vmatpush.msra.mxu0 0.0
    %1092 = vmatpush.msra.mxu0 0.0
    %1093 = vmatpush.msra.mxu0 0.0
    %1094 = vmatpush.msra.mxu0 0.0
    %1095 = vmatpush.msra.mxu0 0.0
    %1096 = vmatpush.msra.mxu0 0.0
    %1097 = vmatpush.msra.mxu0 0.0
    %1098 = vmatpush.msra.mxu0 0.0
    %1099 = vmatpush.msra.mxu0 0.0
    %1100 = vmatpush.msra.mxu0 0.0
    %1101 = vmatpush.msra.mxu0 0.0
    %1102 = vmatpush.msra.mxu0 0.0
    %1103 = vmatpush.msra.mxu0 0.0
    %1104 = vmatpush.msra.mxu0 %v1068
    %1105 = vmatmul.f32.gmra.mxu0 %v769
    %v1106 = vpop.f32.mrf.mxu0
    %v1107 = vadd.f32 0.0, %v1106
    %1108 = vdwg.mxu0
    %v1109 = vld [vmem:[%s19] sm:$0xff]
    %v1110 = vld [vmem:[%s19 + $0x8] sm:$0xff]
    %v1111 = vld [vmem:[%s19 + $0x10] sm:$0xff]
    %v1112 = vld [vmem:[%s19 + $0x18] sm:$0xff]
    %v1113 = vld [vmem:[%s19 + $0x20] sm:$0xff]
    %v1114 = vld [vmem:[%s19 + $0x28] sm:$0xff]
    %v1115 = vld [vmem:[%s19 + $0x30] sm:$0xff]
    %v1116 = vld [vmem:[%s19 + $0x38] sm:$0xff]
    %s1117 = scalar_lea.vmem %s19, 64
    %v1118 = vld [vmem:[%s1117] sm:$0xff]
    %v1119 = vld [vmem:[%s1117 + $0x8] sm:$0xff]
    %v1120 = vld [vmem:[%s1117 + $0x10] sm:$0xff]
    %v1121 = vld [vmem:[%s1117 + $0x18] sm:$0xff]
    %v1122 = vld [vmem:[%s1117 + $0x20] sm:$0xff]
    %v1123 = vld [vmem:[%s1117 + $0x28] sm:$0xff]
    %v1124 = vld [vmem:[%s1117 + $0x30] sm:$0xff]
    %v1125 = vld [vmem:[%s1117 + $0x38] sm:$0xff]
    %v1127 = vsel %vm1044, %v1068, 0
    %1129 = vmatpush.msra.mxu0 0.0
    %1130 = vmatpush.msra.mxu0 0.0
    %1131 = vmatpush.msra.mxu0 0.0
    %1132 = vmatpush.msra.mxu0 0.0
    %1133 = vmatpush.msra.mxu0 0.0
    %1134 = vmatpush.msra.mxu0 0.0
    %1135 = vmatpush.msra.mxu0 0.0
    %1136 = vmatpush.msra.mxu0 0.0
    %1137 = vmatpush.msra.mxu0 0.0
    %1138 = vmatpush.msra.mxu0 0.0
    %1139 = vmatpush.msra.mxu0 0.0
    %1140 = vmatpush.msra.mxu0 0.0
    %1141 = vmatpush.msra.mxu0 %v1124
    %1142 = vmatpush.msra.mxu0 %v1122
    %1143 = vmatpush.msra.mxu0 %v1120
    %1144 = vmatpush.msra.mxu0 %v1118
    %1145 = vmatmul.f32.gmra.mxu0 %v1127
    %v1146 = vpop.f32.mrf.mxu0
    %v1147 = vadd.f32 0.0, %v1146
    %1148 = vdwg.mxu0
    %1149 = vmatpush.msra.mxu0 0.0
    %1150 = vmatpush.msra.mxu0 0.0
    %1151 = vmatpush.msra.mxu0 0.0
    %1152 = vmatpush.msra.mxu0 0.0
    %1153 = vmatpush.msra.mxu0 0.0
    %1154 = vmatpush.msra.mxu0 0.0
    %1155 = vmatpush.msra.mxu0 0.0
    %1156 = vmatpush.msra.mxu0 0.0
    %1157 = vmatpush.msra.mxu0 0.0
    %1158 = vmatpush.msra.mxu0 0.0
    %1159 = vmatpush.msra.mxu0 0.0
    %1160 = vmatpush.msra.mxu0 0.0
    %1161 = vmatpush.msra.mxu0 %v1125
    %1162 = vmatpush.msra.mxu0 %v1123
    %1163 = vmatpush.msra.mxu0 %v1121
    %1164 = vmatpush.msra.mxu0 %v1119
    %1165 = vmatmul.f32.gmra.mxu0 %v1127
    %v1166 = vpop.f32.mrf.mxu0
    %v1167 = vadd.f32 0.0, %v1166
    %1168 = vdwg.mxu0
    %v1170 = vsel %vm1044, %v1087, 0
    %1172 = vmatpush.msra.mxu0 0.0
    %1173 = vmatpush.msra.mxu0 0.0
    %1174 = vmatpush.msra.mxu0 0.0
    %1175 = vmatpush.msra.mxu0 0.0
    %1176 = vmatpush.msra.mxu0 0.0
    %1177 = vmatpush.msra.mxu0 0.0
    %1178 = vmatpush.msra.mxu0 0.0
    %1179 = vmatpush.msra.mxu0 0.0
    %1180 = vmatpush.msra.mxu0 0.0
    %1181 = vmatpush.msra.mxu0 0.0
    %1182 = vmatpush.msra.mxu0 0.0
    %1183 = vmatpush.msra.mxu0 0.0
    %1184 = vmatpush.msra.mxu0 %v1115
    %1185 = vmatpush.msra.mxu0 %v1113
    %1186 = vmatpush.msra.mxu0 %v1111
    %1187 = vmatpush.msra.mxu0 %v1109
    %1188 = vmatmul.f32.gmra.mxu0 %v1170
    %v1189 = vpop.f32.mrf.mxu0
    %v1190 = vadd.f32 %v1147, %v1189
    %1191 = vdwg.mxu0
    %1192 = vmatpush.msra.mxu0 0.0
    %1193 = vmatpush.msra.mxu0 0.0
    %1194 = vmatpush.msra.mxu0 0.0
    %1195 = vmatpush.msra.mxu0 0.0
    %1196 = vmatpush.msra.mxu0 0.0
    %1197 = vmatpush.msra.mxu0 0.0
    %1198 = vmatpush.msra.mxu0 0.0
    %1199 = vmatpush.msra.mxu0 0.0
    %1200 = vmatpush.msra.mxu0 0.0
    %1201 = vmatpush.msra.mxu0 0.0
    %1202 = vmatpush.msra.mxu0 0.0
    %1203 = vmatpush.msra.mxu0 0.0
    %1204 = vmatpush.msra.mxu0 %v1116
    %1205 = vmatpush.msra.mxu0 %v1114
    %1206 = vmatpush.msra.mxu0 %v1112
    %1207 = vmatpush.msra.mxu0 %v1110
    %1208 = vmatmul.f32.gmra.mxu0 %v1170
    %v1209 = vpop.f32.mrf.mxu0
    %v1210 = vadd.f32 %v1167, %v1209
    %1211 = vdwg.mxu0
    %s1212 = scalar_lea.vmem %s19, 128
    %v1213 = vld [vmem:[%s1212] sm:$0xff]
    %v1214 = vld [vmem:[%s1212 + $0x8] sm:$0xff]
    %v1215 = vld [vmem:[%s1212 + $0x10] sm:$0xff]
    %v1216 = vld [vmem:[%s1212 + $0x18] sm:$0xff]
    %v1217 = vld [vmem:[%s1212 + $0x20] sm:$0xff]
    %v1218 = vld [vmem:[%s1212 + $0x28] sm:$0xff]
    %v1219 = vld [vmem:[%s1212 + $0x30] sm:$0xff]
    %v1220 = vld [vmem:[%s1212 + $0x38] sm:$0xff]
    %v1222 = vsel %vm1044, %v1107, 0
    %1224 = vmatpush.msra.mxu0 0.0
    %1225 = vmatpush.msra.mxu0 0.0
    %1226 = vmatpush.msra.mxu0 0.0
    %1227 = vmatpush.msra.mxu0 0.0
    %1228 = vmatpush.msra.mxu0 0.0
    %1229 = vmatpush.msra.mxu0 0.0
    %1230 = vmatpush.msra.mxu0 0.0
    %1231 = vmatpush.msra.mxu0 0.0
    %1232 = vmatpush.msra.mxu0 0.0
    %1233 = vmatpush.msra.mxu0 0.0
    %1234 = vmatpush.msra.mxu0 0.0
    %1235 = vmatpush.msra.mxu0 0.0
    %1236 = vmatpush.msra.mxu0 %v1219
    %1237 = vmatpush.msra.mxu0 %v1217
    %1238 = vmatpush.msra.mxu0 %v1215
    %1239 = vmatpush.msra.mxu0 %v1213
    %1240 = vmatmul.f32.gmra.mxu0 %v1222
    %v1241 = vpop.f32.mrf.mxu0
    %v1242 = vadd.f32 0.0, %v1241
    %1243 = vdwg.mxu0
    %1244 = vmatpush.msra.mxu0 0.0
    %1245 = vmatpush.msra.mxu0 0.0
    %1246 = vmatpush.msra.mxu0 0.0
    %1247 = vmatpush.msra.mxu0 0.0
    %1248 = vmatpush.msra.mxu0 0.0
    %1249 = vmatpush.msra.mxu0 0.0
    %1250 = vmatpush.msra.mxu0 0.0
    %1251 = vmatpush.msra.mxu0 0.0
    %1252 = vmatpush.msra.mxu0 0.0
    %1253 = vmatpush.msra.mxu0 0.0
    %1254 = vmatpush.msra.mxu0 0.0
    %1255 = vmatpush.msra.mxu0 0.0
    %1256 = vmatpush.msra.mxu0 %v1220
    %1257 = vmatpush.msra.mxu0 %v1218
    %1258 = vmatpush.msra.mxu0 %v1216
    %1259 = vmatpush.msra.mxu0 %v1214
    %1260 = vmatmul.f32.gmra.mxu0 %v1222
    %v1261 = vpop.f32.mrf.mxu0
    %v1262 = vadd.f32 0.0, %v1261
    %1263 = vdwg.mxu0
    %v1264 = vadd.f32 %v1190, %v1242
    %v1265 = vadd.f32 %v1210, %v1262
    %v1266 = vld [vmem:[%s20] sm:$0x3]
    %v1268 = vperm.slane %v1266, 0
    %v1269 = vperm.slane %v1266, 1
    %v1272 = vadd.f32 %v1264, %v1268
    %v1273 = vadd.f32 %v1265, %v1269
    %v1274 = vadd.f32 %v717, %v1272
    %v1275 = vadd.f32 %v718, %v1273
    %1276 = vst [vmem:[%s27] sm:$0xff] %v1274
    %1277 = vst [vmem:[%s27 + $0x8] sm:$0xff] %v1275
    %v1278 = vld [vmem:[%s21] sm:$0xff]
    %v1279 = vld [vmem:[%s21 + $0x8] sm:$0xff]
    %v1280 = vld [vmem:[%s21 + $0x10] sm:$0xff]
    %v1281 = vld [vmem:[%s21 + $0x18] sm:$0xff]
    %v1282 = vld [vmem:[%s21 + $0x20] sm:$0xff]
    %v1283 = vld [vmem:[%s21 + $0x28] sm:$0xff]
    %v1284 = vld [vmem:[%s21 + $0x30] sm:$0xff]
    %v1285 = vld [vmem:[%s21 + $0x38] sm:$0xff]
    %v1286 = vld [vmem:[%s21 + $0x40] sm:$0xff]
    %v1287 = vld [vmem:[%s21 + $0x48] sm:$0xff]
    %v1288 = vld [vmem:[%s21 + $0x50] sm:$0xff]
    %v1289 = vld [vmem:[%s21 + $0x58] sm:$0xff]
    %v1290 = vld [vmem:[%s21 + $0x60] sm:$0xff]
    %v1291 = vld [vmem:[%s21 + $0x68] sm:$0xff]
    %v1292 = vld [vmem:[%s21 + $0x70] sm:$0xff]
    %v1293 = vld [vmem:[%s21 + $0x78] sm:$0xff]
    %v1294 = vld [vmem:[%s21 + $0x80] sm:$0xff]
    %v1295 = vld [vmem:[%s21 + $0x88] sm:$0xff]
    %v1296 = vld [vmem:[%s21 + $0x90] sm:$0xff]
    %v1297 = vld [vmem:[%s21 + $0x98] sm:$0xff]
    %v1298 = vld [vmem:[%s21 + $0xa0] sm:$0xff]
    %v1299 = vld [vmem:[%s21 + $0xa8] sm:$0xff]
    %v1300 = vld [vmem:[%s21 + $0xb0] sm:$0xff]
    %v1301 = vld [vmem:[%s21 + $0xb8] sm:$0xff]
    %v1302 = vld [vmem:[%s21 + $0xc0] sm:$0xff]
    %v1303 = vld [vmem:[%s21 + $0xc8] sm:$0xff]
    %v1304 = vld [vmem:[%s21 + $0xd0] sm:$0xff]
    %v1305 = vld [vmem:[%s21 + $0xd8] sm:$0xff]
    %v1306 = vld [vmem:[%s21 + $0xe0] sm:$0xff]
    %v1307 = vld [vmem:[%s21 + $0xe8] sm:$0xff]
    %v1308 = vld [vmem:[%s21 + $0xf0] sm:$0xff]
    %v1309 = vld [vmem:[%s21 + $0xf8] sm:$0xff]
    %1310 = vmatpush.msra.mxu0 %v1293
    %1311 = vmatpush.msra.mxu0 %v1292
    %1312 = vmatpush.msra.mxu0 %v1291
    %1313 = vmatpush.msra.mxu0 %v1290
    %1314 = vmatpush.msra.mxu0 %v1289
    %1315 = vmatpush.msra.mxu0 %v1288
    %1316 = vmatpush.msra.mxu0 %v1287
    %1317 = vmatpush.msra.mxu0 %v1286
    %1318 = vmatpush.msra.mxu0 %v1285
    %1319 = vmatpush.msra.mxu0 %v1284
    %1320 = vmatpush.msra.mxu0 %v1283
    %1321 = vmatpush.msra.mxu0 %v1282
    %1322 = vmatpush.msra.mxu0 %v1281
    %1323 = vmatpush.msra.mxu0 %v1280
    %1324 = vmatpush.msra.mxu0 %v1279
    %1325 = vmatpush.msra.mxu0 %v1278
    %1326 = vmatmul.f32.gmra.mxu0 %v1274
    %v1327 = vpop.f32.mrf.mxu0
    %v1328 = vadd.f32 0.0, %v1327
    %1329 = vdwg.mxu0
    %1330 = vmatpush.msra.mxu0 %v1309
    %1331 = vmatpush.msra.mxu0 %v1308
    %1332 = vmatpush.msra.mxu0 %v1307
    %1333 = vmatpush.msra.mxu0 %v1306
    %1334 = vmatpush.msra.mxu0 %v1305
    %1335 = vmatpush.msra.mxu0 %v1304
    %1336 = vmatpush.msra.mxu0 %v1303
    %1337 = vmatpush.msra.mxu0 %v1302
    %1338 = vmatpush.msra.mxu0 %v1301
    %1339 = vmatpush.msra.mxu0 %v1300
    %1340 = vmatpush.msra.mxu0 %v1299
    %1341 = vmatpush.msra.mxu0 %v1298
    %1342 = vmatpush.msra.mxu0 %v1297
    %1343 = vmatpush.msra.mxu0 %v1296
    %1344 = vmatpush.msra.mxu0 %v1295
    %1345 = vmatpush.msra.mxu0 %v1294
    %1346 = vmatmul.f32.gmra.mxu0 %v1275
    %v1347 = vpop.f32.mrf.mxu0
    %v1348 = vadd.f32 %v1328, %v1347
    %1349 = vdwg.mxu0
    %v1350 = vmul.f32 %v1274, %v1274
    %v1351 = vmul.f32 %v1275, %v1275
    %1352 = vmatpush.msra.mxu0 %v1293
    %1353 = vmatpush.msra.mxu0 %v1292
    %1354 = vmatpush.msra.mxu0 %v1291
    %1355 = vmatpush.msra.mxu0 %v1290
    %1356 = vmatpush.msra.mxu0 %v1289
    %1357 = vmatpush.msra.mxu0 %v1288
    %1358 = vmatpush.msra.mxu0 %v1287
    %1359 = vmatpush.msra.mxu0 %v1286
    %1360 = vmatpush.msra.mxu0 %v1285
    %1361 = vmatpush.msra.mxu0 %v1284
    %1362 = vmatpush.msra.mxu0 %v1283
    %1363 = vmatpush.msra.mxu0 %v1282
    %1364 = vmatpush.msra.mxu0 %v1281
    %1365 = vmatpush.msra.mxu0 %v1280
    %1366 = vmatpush.msra.mxu0 %v1279
    %1367 = vmatpush.msra.mxu0 %v1278
    %1368 = vmatmul.f32.gmra.mxu0 %v1350
    %v1369 = vpop.f32.mrf.mxu0
    %v1370 = vadd.f32 0.0, %v1369
    %1371 = vdwg.mxu0
    %1372 = vmatpush.msra.mxu0 %v1309
    %1373 = vmatpush.msra.mxu0 %v1308
    %1374 = vmatpush.msra.mxu0 %v1307
    %1375 = vmatpush.msra.mxu0 %v1306
    %1376 = vmatpush.msra.mxu0 %v1305
    %1377 = vmatpush.msra.mxu0 %v1304
    %1378 = vmatpush.msra.mxu0 %v1303
    %1379 = vmatpush.msra.mxu0 %v1302
    %1380 = vmatpush.msra.mxu0 %v1301
    %1381 = vmatpush.msra.mxu0 %v1300
    %1382 = vmatpush.msra.mxu0 %v1299
    %1383 = vmatpush.msra.mxu0 %v1298
    %1384 = vmatpush.msra.mxu0 %v1297
    %1385 = vmatpush.msra.mxu0 %v1296
    %1386 = vmatpush.msra.mxu0 %v1295
    %1387 = vmatpush.msra.mxu0 %v1294
    %1388 = vmatmul.f32.gmra.mxu0 %v1351
    %v1389 = vpop.f32.mrf.mxu0
    %v1390 = vadd.f32 %v1370, %v1389
    %1391 = vdwg.mxu0
    %v1392 = vsel %vm308, %v1348, 0.0
    %v1393 = vrot.slane %v1392, 4
    %v1394 = vadd.f32 %v1392, %v1393
    %v1395 = vrot.slane %v1394, 2
    %v1396 = vadd.f32 %v1394, %v1395
    %v1397 = vrot.slane %v1396, 1
    %v1398 = vadd.f32 %v1396, %v1397
    %v1399 = vmul.f32 %v1398, 0.03125
    %v1400 = vsel %vm308, %v1390, 0.0
    %v1401 = vrot.slane %v1400, 4
    %v1402 = vadd.f32 %v1400, %v1401
    %v1403 = vrot.slane %v1402, 2
    %v1404 = vadd.f32 %v1402, %v1403
    %v1405 = vrot.slane %v1404, 1
    %v1406 = vadd.f32 %v1404, %v1405
    %v1407 = vmul.f32 %v1406, 0.03125
    %v1408 = vmul.f32 %v1399, %v1399
    %v1409 = vsub.f32 %v1407, %v1408
    %1411 = vrot.lane.b32.xlu0 %v1399, 64
    %v1412 = vpop.permute.xlu0 %1411
    %v1414 = vsel %vm308, %v1399, %v1412
    %1416 = vrot.lane.b32.xlu0 %v1409, 64
    %v1417 = vpop.permute.xlu0 %1416
    %v1419 = vsel %vm308, %v1409, %v1417
    %v1420 = vperm.slane %v1414, 0
    %v1421 = vsub.f32 %v1274, %v1420
    %v1422 = vsub.f32 %v1275, %v1420
    %v1423 = vadd.f32 %v1419, 1e-05
    %v1424 = vrsqrt.pop %v1423
    %v1425 = vmul.f32 %v1424, %v1423
    %v1426 = vmul.f32 %v1425, %v1424
    %v1427 = vmul.f32 0.5, %v1426
    %v1428 = vsub.f32 1.5, %v1427
    %v1429 = vmul.f32 %v1424, %v1428
    %vm1430 = vweird.f32 %v1423
    %vm1431 = vweird.f32 %v1424
    %vm1432 = vmor %vm1430, %vm1431
    %v1433 = vsel %vm1432, %v1424, %v1429
    %v1434 = vperm.slane %v1433, 0
    %v1435 = vmul.f32 %v1421, %v1434
    %v1436 = vmul.f32 %v1422, %v1434
    %v1437 = vld [vmem:[%s23] sm:$0x3]
    %v1439 = vperm.slane %v1437, 0
    %v1440 = vperm.slane %v1437, 1
    %v1443 = vmul.f32 %v1435, %v1439
    %v1444 = vmul.f32 %v1436, %v1440
    %v1445 = vld [vmem:[%s24] sm:$0x3]
    %v1447 = vperm.slane %v1445, 0
    %v1448 = vperm.slane %v1445, 1
    %v1451 = vadd.f32 %v1443, %v1447
    %v1452 = vadd.f32 %v1444, %v1448
    %v1453 = vmax.f32 %v1451, 0.0
    %v1454 = vmax.f32 %v1452, 0.0
    %v1455 = vld [vmem:[%s22] sm:$0x3]
    %1456 = vmatpush.msra.mxu0 %v1293
    %1457 = vmatpush.msra.mxu0 %v1292
    %1458 = vmatpush.msra.mxu0 %v1291
    %1459 = vmatpush.msra.mxu0 %v1290
    %1460 = vmatpush.msra.mxu0 %v1289
    %1461 = vmatpush.msra.mxu0 %v1288
    %1462 = vmatpush.msra.mxu0 %v1287
    %1463 = vmatpush.msra.mxu0 %v1286
    %1464 = vmatpush.msra.mxu0 %v1285
    %1465 = vmatpush.msra.mxu0 %v1284
    %1466 = vmatpush.msra.mxu0 %v1283
    %1467 = vmatpush.msra.mxu0 %v1282
    %1468 = vmatpush.msra.mxu0 %v1281
    %1469 = vmatpush.msra.mxu0 %v1280
    %1470 = vmatpush.msra.mxu0 %v1279
    %1471 = vmatpush.msra.mxu0 %v1278
    %1472 = vmatmul.f32.gmra.mxu0 %v1453
    %v1473 = vpop.f32.mrf.mxu0
    %v1474 = vadd.f32 0.0, %v1473
    %1475 = vdwg.mxu0
    %1476 = vmatpush.msra.mxu0 %v1309
    %1477 = vmatpush.msra.mxu0 %v1308
    %1478 = vmatpush.msra.mxu0 %v1307
    %1479 = vmatpush.msra.mxu0 %v1306
    %1480 = vmatpush.msra.mxu0 %v1305
    %1481 = vmatpush.msra.mxu0 %v1304
    %1482 = vmatpush.msra.mxu0 %v1303
    %1483 = vmatpush.msra.mxu0 %v1302
    %1484 = vmatpush.msra.mxu0 %v1301
    %1485 = vmatpush.msra.mxu0 %v1300
    %1486 = vmatpush.msra.mxu0 %v1299
    %1487 = vmatpush.msra.mxu0 %v1298
    %1488 = vmatpush.msra.mxu0 %v1297
    %1489 = vmatpush.msra.mxu0 %v1296
    %1490 = vmatpush.msra.mxu0 %v1295
    %1491 = vmatpush.msra.mxu0 %v1294
    %1492 = vmatmul.f32.gmra.mxu0 %v1454
    %v1493 = vpop.f32.mrf.mxu0
    %v1494 = vadd.f32 %v1474, %v1493
    %1495 = vdwg.mxu0
    %v1497 = vsel %vm722, %v1455, 0
    %1499 = vmatpush.msra.mxu0 0.0
    %1500 = vmatpush.msra.mxu0 0.0
    %1501 = vmatpush.msra.mxu0 0.0
    %1502 = vmatpush.msra.mxu0 0.0
    %1503 = vmatpush.msra.mxu0 0.0
    %1504 = vmatpush.msra.mxu0 0.0
    %1505 = vmatpush.msra.mxu0 0.0
    %1506 = vmatpush.msra.mxu0 0.0
    %1507 = vmatpush.msra.mxu0 0.0
    %1508 = vmatpush.msra.mxu0 0.0
    %1509 = vmatpush.msra.mxu0 0.0
    %1510 = vmatpush.msra.mxu0 0.0
    %1511 = vmatpush.msra.mxu0 0.0
    %1512 = vmatpush.msra.mxu0 0.0
    %1513 = vmatpush.msra.mxu0 0.0
    %1514 = vmatpush.msra.mxu0 %v1494
    %1515 = vmatmul.f32.gmra.mxu0 %v1497
    %v1516 = vpop.f32.mrf.mxu0
    %v1517 = vadd.f32 0.0, %v1516
    %1518 = vdwg.mxu0
    %v1519 = vmul.f32 %v1517, 0.0625
    %v1520 = vld [vmem:[%s25] sm:$0xff]
    %v1521 = vld [vmem:[%s25 + $0x8] sm:$0xff]
    %v1522 = vld [vmem:[%s25 + $0x10] sm:$0xff]
    %v1523 = vld [vmem:[%s25 + $0x18] sm:$0xff]
    %v1524 = vld [vmem:[%s25 + $0x20] sm:$0xff]
    %v1525 = vld [vmem:[%s25 + $0x28] sm:$0xff]
    %v1526 = vld [vmem:[%s25 + $0x30] sm:$0xff]
    %v1527 = vld [vmem:[%s25 + $0x38] sm:$0xff]
    %v1528 = vld [vmem:[%s26] sm:$0x1]
    %v1530 = vperm.slane %v1528, 0
    %v1533 = vsel %vm308, %v1519, 0
    %1535 = vmatpush.msra.mxu0 0.0
    %1536 = vmatpush.msra.mxu0 0.0
    %1537 = vmatpush.msra.mxu0 0.0
    %1538 = vmatpush.msra.mxu0 0.0
    %1539 = vmatpush.msra.mxu0 0.0
    %1540 = vmatpush.msra.mxu0 0.0
    %1541 = vmatpush.msra.mxu0 0.0
    %1542 = vmatpush.msra.mxu0 0.0
    %1543 = vmatpush.msra.mxu0 %v1527
    %1544 = vmatpush.msra.mxu0 %v1526
    %1545 = vmatpush.msra.mxu0 %v1525
    %1546 = vmatpush.msra.mxu0 %v1524
    %1547 = vmatpush.msra.mxu0 %v1523
    %1548 = vmatpush.msra.mxu0 %v1522
    %1549 = vmatpush.msra.mxu0 %v1521
    %1550 = vmatpush.msra.mxu0 %v1520
    %1551 = vmatmul.f32.gmra.mxu0 %v1533
    %v1552 = vpop.f32.mrf.mxu0
    %v1553 = vadd.f32 %v1530, %v1552
    %1554 = vdwg.mxu0
    %1555 = vst [vmem:[#allocation2] sm:$0x3] %v1553
    // Predicated region
    $region110: #{iresnet_forward_pallas.1} parent=1 // pred_check
      _
    $region111: #{iresnet_forward_pallas.1} parent=1 // pred_check_branch
      %1557 = sbr.rel (0) target = $region113
    $region112: #{iresnet_forward_pallas.1} parent=1 // pred_region
      _
    $region113: #{iresnet_forward_pallas.1} parent=1 // pred_fallthru
      _
    // Predicated region
    $region114: #{iresnet_forward_pallas.1} parent=1 // pred_check
      _
    $region115: #{iresnet_forward_pallas.1} parent=1 // pred_check_branch
      %1559 = sbr.rel (0) target = $region117
    $region116: #{iresnet_forward_pallas.1} parent=1 // pred_region
      %1561 = vsyncadd [#allocation3], 0
      %s1563 = sshll.u32 [#allocation2], 4
      %s1564 = int_to_ptr.vmem [resolvable:$true] %s1563
      %s1565 = sshll.u32 %s28, 4
      %s1566 = int_to_ptr.hbm [resolvable:$true] %s1565
      %1568 = dma.vmem_to_hbm [thread:$0]  %s1564, 32, %s1566, [#allocation3]
    $region117: #{iresnet_forward_pallas.1} parent=1 // pred_fallthru
      _
    // Predicated region
    $region118: #{iresnet_forward_pallas.1} parent=1 // pred_check
      _
    $region119: #{iresnet_forward_pallas.1} parent=1 // pred_check_branch
      %1570 = sbr.rel (0) target = $region121
    $region120: #{iresnet_forward_pallas.1} parent=1 // pred_region
      _
    $region121: #{iresnet_forward_pallas.1} parent=1 // pred_fallthru
      _
    // Predicated region
    $region122: #{iresnet_forward_pallas.1} parent=1 // pred_check
      _
    $region123: #{iresnet_forward_pallas.1} parent=1 // pred_check_branch
      %1572 = sbr.rel (0) target = $region125
    $region124: #{iresnet_forward_pallas.1} parent=1 // pred_region
      %1574 = dma.done [#allocation3], 32
    $region125: #{iresnet_forward_pallas.1} parent=1 // pred_fallthru
      _
    %1575 = vsyncpa [#allocation3], 1

</llo_original>
